<compile_context>
chip_gen: v7x
topology: tpu7x:2x2x1
jax: 0.10.0
libtpu: 0.0.40
codegen_flags: <defaults>
</compile_context>

<pallas_src>
import functools

import jax
import jax.numpy as jnp
from jax.experimental import pallas as pl
from jax.experimental.pallas import tpu as pltpu


# bf16 operands on the MXU (f32 accumulation).  Set to jnp.float32 for exact
# f32 forward semantics (at the cost of ~2-3x matmul throughput).
MATMUL_DTYPE = jnp.bfloat16
LN_EPS = 1e-5


# ------------------------------------------------------------ kernel helpers

def _layer_norm(x, g, b):
    """LayerNorm over the last dim (f32 math, matches torch.nn.LayerNorm)."""
    mu = jnp.mean(x, axis=-1, keepdims=True)
    var = jnp.mean(jnp.square(x - mu), axis=-1, keepdims=True)
    return (x - mu) * jax.lax.rsqrt(var + LN_EPS) * g + b


# ------------------------------------------------------------------ kernel --

def _decoder_kernel(sf_ref, tf_ref, ln_ref, sa_wqkv_ref, sa_wo_ref,
                    ca_wqkv_ref, ca_wo_ref, ff_w1_ref, ff_b1_ref, ff_w2_ref,
                    bvec_ref, o_ref, carry_ref,
                    *, heads, dim_head, scale, cast_dtype):
    """One grid step = one (batch element, decoder layer)."""
    layer = pl.program_id(1)

    # Load this batch element's sf into the persistent f32 carry at layer 0.
    @pl.when(layer == 0)
    def _():
        carry_ref[...] = sf_ref[0].astype(jnp.float32)

    x = carry_ref[...]                                   # (ns, dim) f32, sf_pe
    tf = tf_ref[0].astype(jnp.float32)                   # (nt, dim) f32

    lnp = ln_ref[0].astype(jnp.float32)                  # (6, dim) LN params
    bv = bvec_ref[0].astype(jnp.float32)                 # (3, dim) out biases

    def mm(a, w):
        """MXU matmul: bf16 operands, f32 accumulation."""
        return jnp.dot(a.astype(cast_dtype), w.astype(cast_dtype),
                       preferred_element_type=jnp.float32)

    def attention(q_in, kv_in, wqkv_ref, wo_ref, bo):
        """Multi-head SDPA.  Per-head projection weights are indexed along
        leading ref axes (cheap views) and the out-projection is accumulated
        per head -> no sub-128-lane slicing and no head concat."""
        proj = None
        for h in range(heads):                           # static, unrolled
            qh = mm(q_in, wqkv_ref[0, 0, h])             # (nq, dh)
            kh = mm(kv_in, wqkv_ref[0, 1, h])            # (nk, dh)
            vh = mm(kv_in, wqkv_ref[0, 2, h])            # (nk, dh)
            # q . k^T expressed as a contraction over dim_head (no transpose).
            sim = jax.lax.dot_general(
                qh.astype(cast_dtype), kh.astype(cast_dtype),
                dimension_numbers=(((1,), (1,)), ((), ())),
                preferred_element_type=jnp.float32) * scale       # (nq, nk)
            sim = sim - jnp.max(sim, axis=-1, keepdims=True)
            p = jnp.exp(sim)                              # f32 softmax math
            p = p / jnp.sum(p, axis=-1, keepdims=True)    # exact divide
            head_out = mm(mm(p, vh), wo_ref[0, h])        # (nq, dim)
            proj = head_out if proj is None else proj + head_out
        return proj + bo

    # ---- self-attention stage: sf_pe = PreNorm(Attention)(sf_pe) + sf_pe ----
    xn = _layer_norm(x, lnp[0:1], lnp[1:2])
    x = x + attention(xn, xn, sa_wqkv_ref, sa_wo_ref, bv[0:1])
    carry_ref[...] = x                                    # carried to next layer

    # ---- cross-attention: cross = MulPreNorm(CrossAttn)(sf_pe, tf, tf) + sf_pe
    qn = _layer_norm(x, lnp[2:3], lnp[3:4])               # shared LN weights
    kvn = _layer_norm(tf, lnp[2:3], lnp[3:4])
    cross = x + attention(qn, kvn, ca_wqkv_ref, ca_wo_ref, bv[1:2])

    # ---- feed-forward stage: cross = PreNorm(FF)(cross) + cross ----
    cn = _layer_norm(cross, lnp[4:5], lnp[5:6])
    h1 = jnp.maximum(mm(cn, ff_w1_ref[0]) + ff_b1_ref[0].astype(jnp.float32),
                     0.0)                                  # (ns, hidden) ReLU
    cross = cross + mm(h1, ff_w2_ref[0]) + bv[2:3]

    # Output block index is constant along the depth axis -> block stays
    # resident in VMEM; HBM writeback happens once, after the last layer.
    o_ref[0] = cross.astype(o_ref.dtype)


# ----------------------------------------------------------------- wrapper --

def decoder_forward(params, sf, tf, *, heads, dim_head):
    b, ns, dim = sf.shape
    nt = tf.shape[1]
    depth = params['ln'].shape[0]

    kern = functools.partial(_decoder_kernel, heads=heads, dim_head=dim_head,
                             scale=dim_head ** (-0.5), cast_dtype=MATMUL_DTYPE)

    def w_spec(shape):
        """Per-layer weight slab: streamed (double-buffered) along depth."""
        nd = len(shape)
        return pl.BlockSpec((1,) + tuple(shape[1:]),
                            lambda bi, l: (l,) + (0,) * (nd - 1))

    return pl.pallas_call(
        kern,
        grid=(b, depth),
        in_specs=[
            pl.BlockSpec((1, ns, dim), lambda bi, l: (bi, 0, 0)),   # sf
            pl.BlockSpec((1, nt, dim), lambda bi, l: (bi, 0, 0)),   # tf
            w_spec(params['ln'].shape),        # (depth, 6, dim)
            w_spec(params['sa_wqkv'].shape),   # (depth, 3, H, dim, dh)
            w_spec(params['sa_wo'].shape),     # (depth, H, dh, dim)
            w_spec(params['ca_wqkv'].shape),   # (depth, 3, H, dim, dh)
            w_spec(params['ca_wo'].shape),     # (depth, H, dh, dim)
            w_spec(params['ff_w1'].shape),     # (depth, dim, hidden)
            w_spec(params['ff_b1'].shape),     # (depth, 1, hidden)
            w_spec(params['ff_w2'].shape),     # (depth, hidden, dim)
            w_spec(params['bvec'].shape),      # (depth, 3, dim)
        ],
        out_specs=pl.BlockSpec((1, ns, dim), lambda bi, l: (bi, 0, 0)),
        out_shape=jax.ShapeDtypeStruct((b, ns, dim), sf.dtype),
        scratch_shapes=[pltpu.VMEM((ns, dim), jnp.float32)],       # sf_pe carry
        compiler_params=pltpu.CompilerParams(
            dimension_semantics=("parallel", "arbitrary")),
    )(sf, tf, params['ln'], params['sa_wqkv'], params['sa_wo'],
      params['ca_wqkv'], params['ca_wo'], params['ff_w1'], params['ff_b1'],
      params['ff_w2'], params['bvec'])


# -------------------------------------------------------------- parameters --

def init_decoder_params(key, dim, dim_head, heads, depth, ff_mult=4):
    """Random decoder parameters in the kernel layout.

    Mapping from the PyTorch module (per layer):
      ln      = [sa.norm.{weight,bias}, ca.norm.{weight,bias}, ff.norm.{weight,bias}]
      sa_wqkv = to_qkv.weight.T.reshape(dim, 3, H, dh).transpose(1, 2, 0, 3)
      sa_wo   = attn.to_out[0].weight.T.reshape(H, dh, dim)
      ca_wqkv = stack of to_q/to_k/to_v .weight.T.reshape(dim, H, dh).transpose(1, 0, 2)
      ca_wo   = cross.to_out[0].weight.T.reshape(H, dh, dim)
      ff_w1/b1/w2 = net[0].weight.T / net[0].bias / net[3].weight.T
      bvec    = [attn.to_out[0].bias, cross.to_out[0].bias, ff.net[3].bias]
    """
    hidden = dim * ff_mult
    ks = jax.random.split(key, 10)

    def rnd(k, shape, s=0.05):
        return s * jax.random.normal(k, shape, jnp.float32)

    gammas = 1.0 + rnd(ks[0], (depth, 3, dim))
    betas = rnd(ks[1], (depth, 3, dim))
    ln = jnp.stack([gammas, betas], axis=2).reshape(depth, 6, dim)

    return dict(
        ln=ln,
        sa_wqkv=rnd(ks[2], (depth, 3, heads, dim, dim_head)),
        sa_wo=rnd(ks[3], (depth, heads, dim_head, dim)),
        ca_wqkv=rnd(ks[4], (depth, 3, heads, dim, dim_head)),
        ca_wo=rnd(ks[5], (depth, heads, dim_head, dim)),
        ff_w1=rnd(ks[6], (depth, dim, hidden)),
        ff_b1=rnd(ks[7], (depth, 1, hidden)),
        ff_w2=rnd(ks[8], (depth, hidden, dim)),
        bvec=rnd(ks[9], (depth, 3, dim)),
    )


# -------------------------------------------------- pure-JAX f32 reference --

def decoder_reference(params, sf, tf, *, heads, dim_head):
    scale = dim_head ** (-0.5)

    def ln(x, g, b):
        mu = x.mean(-1, keepdims=True)
        var = ((x - mu) ** 2).mean(-1, keepdims=True)
        return (x - mu) / jnp.sqrt(var + LN_EPS) * g + b

    def attn(q_in, kv_in, wqkv, wo, bo):
        out = 0.0
        for h in range(heads):
            q = q_in @ wqkv[0, h]
            k = kv_in @ wqkv[1, h]
            v = kv_in @ wqkv[2, h]
            p = jax.nn.softmax(jnp.einsum('bqd,bkd->bqk', q, k) * scale, -1)
            out = out + jnp.einsum('bqk,bkd->bqd', p, v) @ wo[h]
        return out + bo

    depth = params['ln'].shape[0]
    x, cross = sf, None
    for l in range(depth):
        lnp, bv = params['ln'][l], params['bvec'][l]
        xn = ln(x, lnp[0], lnp[1])
        x = x + attn(xn, xn, params['sa_wqkv'][l], params['sa_wo'][l], bv[0])
        qn, kvn = ln(x, lnp[2], lnp[3]), ln(tf, lnp[2], lnp[3])
        cross = x + attn(qn, kvn, params['ca_wqkv'][l], params['ca_wo'][l], bv[1])
        cn = ln(cross, lnp[4], lnp[5])
        h1 = jax.nn.relu(cn @ params['ff_w1'][l] + params['ff_b1'][l, 0])
        cross = cross + h1 @ params['ff_w2'][l] + bv[2]
    return cross


# --------------------------------------------------------------------- main --

if __name__ == "__main__":
    dim, dim_head, heads, depth = 32, 16, 2, 2
    b, n_sf, n_tf = 2, 8, 12

    key = jax.random.PRNGKey(0)
    k_sf, k_tf, k_par = jax.random.split(key, 3)
    sf = jax.random.normal(k_sf, (b, n_sf, dim), jnp.float32)
    tf = jax.random.normal(k_tf, (b, n_tf, dim), jnp.float32)
    params = init_decoder_params(k_par, dim, dim_head, heads, depth)

    fwd = jax.jit(functools.partial(decoder_forward,
                                    heads=heads, dim_head=dim_head))
    out = jax.block_until_ready(fwd(params, sf, tf))
    assert out.shape == (b, n_sf, dim)

    # Tolerance check vs. pure-JAX f32 reference (bf16 matmul operands in the
    # kernel give small deviations; structural bugs would be O(1)).
    ref = decoder_reference(params, sf, tf, heads=heads, dim_head=dim_head)
    err = float(jnp.max(jnp.abs(out - ref)))
    assert err < 1e-1, f"max abs error vs reference: {err}"
    print("KERNEL_OK")
</pallas_src>

<mosaic_0001>
module attributes {stable_mosaic.version = 11 : i64} {
  func.func @_decoder_kernel(%arg0: i32, %arg1: i32, %arg2: memref<1x8x32xf32, #tpu.memory_space<vmem>>, %arg3: memref<1x12x32xf32, #tpu.memory_space<vmem>>, %arg4: memref<1x6x32xf32, #tpu.memory_space<vmem>>, %arg5: memref<1x3x2x32x16xf32, #tpu.memory_space<vmem>>, %arg6: memref<1x2x16x32xf32, #tpu.memory_space<vmem>>, %arg7: memref<1x3x2x32x16xf32, #tpu.memory_space<vmem>>, %arg8: memref<1x2x16x32xf32, #tpu.memory_space<vmem>>, %arg9: memref<1x32x128xf32, #tpu.memory_space<vmem>>, %arg10: memref<1x1x128xf32, #tpu.memory_space<vmem>>, %arg11: memref<1x128x32xf32, #tpu.memory_space<vmem>>, %arg12: memref<1x3x32xf32, #tpu.memory_space<vmem>>, %arg13: memref<1x8x32xf32, #tpu.memory_space<vmem>>, %arg14: memref<8x32xf32, #tpu.memory_space<vmem>>) attributes {dimension_semantics = [#tpu.dimension_semantics<parallel>, #tpu.dimension_semantics<arbitrary>], iteration_bounds = array<i64: 2, 2>, scalar_prefetch = 0 : i64, scratch_operands = 1 : i64, tpu.core_type = #tpu.core_type<tc>, window_params = [{transform_indices = @transform_0, window_bounds = array<i64: 1, 8, 32>}, {transform_indices = @transform_1, window_bounds = array<i64: 1, 12, 32>}, {transform_indices = @transform_2, window_bounds = array<i64: 1, 6, 32>}, {transform_indices = @transform_3, window_bounds = array<i64: 1, 3, 2, 32, 16>}, {transform_indices = @transform_4, window_bounds = array<i64: 1, 2, 16, 32>}, {transform_indices = @transform_5, window_bounds = array<i64: 1, 3, 2, 32, 16>}, {transform_indices = @transform_6, window_bounds = array<i64: 1, 2, 16, 32>}, {transform_indices = @transform_7, window_bounds = array<i64: 1, 32, 128>}, {transform_indices = @transform_8, window_bounds = array<i64: 1, 1, 128>}, {transform_indices = @transform_9, window_bounds = array<i64: 1, 128, 32>}, {transform_indices = @transform_10, window_bounds = array<i64: 1, 3, 32>}, {transform_indices = @transform_11, window_bounds = array<i64: 1, 8, 32>}]} {
    %c0_i32 = arith.constant 0 : i32
    %0 = arith.cmpi eq, %arg1, %c0_i32 : i32
    %1 = arith.extui %0 : i1 to i32
    %c0_i32_0 = arith.constant 0 : i32
    %2 = arith.cmpi ne, %1, %c0_i32_0 : i32
    scf.if %2 {
      %c0_157 = arith.constant 0 : index
      %c0_158 = arith.constant 0 : index
      %c0_159 = arith.constant 0 : index
      %288 = vector.load %arg2[%c0_157, %c0_158, %c0_159] : memref<1x8x32xf32, #tpu.memory_space<vmem>>, vector<1x8x32xf32>
      %289 = vector.shape_cast %288 : vector<1x8x32xf32> to vector<8x32xf32>
      %c0_160 = arith.constant 0 : index
      %c0_161 = arith.constant 0 : index
      %290 = vector.load %arg14[%c0_160, %c0_161] : memref<8x32xf32, #tpu.memory_space<vmem>>, vector<8x32xf32>
      tpu.vector_store %arg14[%c0_160, %c0_161], %289 {strides = array<i32>} : memref<8x32xf32, #tpu.memory_space<vmem>>, vector<8x32xf32>,
    } else {
    }
    %c0 = arith.constant 0 : index
    %c0_1 = arith.constant 0 : index
    %3 = vector.load %arg14[%c0, %c0_1] : memref<8x32xf32, #tpu.memory_space<vmem>>, vector<8x32xf32>
    %c0_2 = arith.constant 0 : index
    %c0_3 = arith.constant 0 : index
    %c0_4 = arith.constant 0 : index
    %4 = vector.load %arg3[%c0_2, %c0_3, %c0_4] : memref<1x12x32xf32, #tpu.memory_space<vmem>>, vector<1x12x32xf32>
    %5 = vector.shape_cast %4 : vector<1x12x32xf32> to vector<12x32xf32>
    %c0_5 = arith.constant 0 : index
    %c0_6 = arith.constant 0 : index
    %c0_7 = arith.constant 0 : index
    %6 = vector.load %arg4[%c0_5, %c0_6, %c0_7] : memref<1x6x32xf32, #tpu.memory_space<vmem>>, vector<1x6x32xf32>
    %7 = vector.shape_cast %6 : vector<1x6x32xf32> to vector<6x32xf32>
    %c0_8 = arith.constant 0 : index
    %c0_9 = arith.constant 0 : index
    %c0_10 = arith.constant 0 : index
    %8 = vector.load %arg12[%c0_8, %c0_9, %c0_10] : memref<1x3x32xf32, #tpu.memory_space<vmem>>, vector<1x3x32xf32>
    %9 = vector.shape_cast %8 : vector<1x3x32xf32> to vector<3x32xf32>
    %10 = vector.extract_strided_slice %7 {offsets = [0, 0], sizes = [1, 32], strides = [1, 1]} : vector<6x32xf32> to vector<1x32xf32>
    %11 = vector.extract_strided_slice %7 {offsets = [1, 0], sizes = [1, 32], strides = [1, 1]} : vector<6x32xf32> to vector<1x32xf32>
    %cst = arith.constant dense<0.000000e+00> : vector<8xf32>
    %12 = vector.multi_reduction <add>, %3, %cst [1] : vector<8x32xf32> to vector<8xf32>
    %13 = vector.shape_cast %12 : vector<8xf32> to vector<8x1xf32>
    %cst_11 = arith.constant 3.200000e+01 : f32
    %14 = vector.broadcast %cst_11 : f32 to vector<8x1xf32>
    %15 = arith.divf %13, %14 : vector<8x1xf32>
    %16 = vector.broadcast %15 : vector<8x1xf32> to vector<8x32xf32>
    %17 = arith.subf %3, %16 : vector<8x32xf32>
    %18 = arith.mulf %17, %17 : vector<8x32xf32>
    %cst_12 = arith.constant dense<0.000000e+00> : vector<8xf32>
    %19 = vector.multi_reduction <add>, %18, %cst_12 [1] : vector<8x32xf32> to vector<8xf32>
    %20 = vector.shape_cast %19 : vector<8xf32> to vector<8x1xf32>
    %cst_13 = arith.constant 3.200000e+01 : f32
    %21 = vector.broadcast %cst_13 : f32 to vector<8x1xf32>
    %22 = arith.divf %20, %21 : vector<8x1xf32>
    %23 = vector.broadcast %15 : vector<8x1xf32> to vector<8x32xf32>
    %24 = arith.subf %3, %23 : vector<8x32xf32>
    %cst_14 = arith.constant 9.99999974E-6 : f32
    %25 = vector.broadcast %cst_14 : f32 to vector<8x1xf32>
    %26 = arith.addf %22, %25 : vector<8x1xf32>
    %27 = math.rsqrt %26 : vector<8x1xf32>
    %28 = vector.broadcast %27 : vector<8x1xf32> to vector<8x32xf32>
    %29 = arith.mulf %24, %28 : vector<8x32xf32>
    %30 = vector.broadcast %10 : vector<1x32xf32> to vector<8x32xf32>
    %31 = arith.mulf %29, %30 : vector<8x32xf32>
    %32 = vector.broadcast %11 : vector<1x32xf32> to vector<8x32xf32>
    %33 = arith.addf %31, %32 : vector<8x32xf32>
    %34 = vector.extract_strided_slice %9 {offsets = [0, 0], sizes = [1, 32], strides = [1, 1]} : vector<3x32xf32> to vector<1x32xf32>
    %c0_15 = arith.constant 0 : index
    %c0_16 = arith.constant 0 : index
    %c0_17 = arith.constant 0 : index
    %c0_18 = arith.constant 0 : index
    %c0_19 = arith.constant 0 : index
    %35 = vector.load %arg5[%c0_15, %c0_16, %c0_17, %c0_18, %c0_19] : memref<1x3x2x32x16xf32, #tpu.memory_space<vmem>>, vector<1x1x1x32x16xf32>
    %36 = vector.shape_cast %35 : vector<1x1x1x32x16xf32> to vector<32x16xf32>
    %37 = arith.truncf %33 : vector<8x32xf32> to vector<8x32xbf16>
    %38 = arith.truncf %36 : vector<32x16xf32> to vector<32x16xbf16>
    %cst_20 = arith.constant dense<0.000000e+00> : vector<8x16xf32>
    %39 = tpu.matmul %37, %38, %cst_20 {dimension_numbers = #tpu.dot_dimension_numbers<[1], [0], [0], [1], [0, 0, 1, 1], [], []>} : vector<8x32xbf16>, vector<32x16xbf16>, vector<8x16xf32> -> vector<8x16xf32>
    %c0_21 = arith.constant 0 : index
    %c1 = arith.constant 1 : index
    %c0_22 = arith.constant 0 : index
    %c0_23 = arith.constant 0 : index
    %c0_24 = arith.constant 0 : index
    %40 = vector.load %arg5[%c0_21, %c1, %c0_22, %c0_23, %c0_24] : memref<1x3x2x32x16xf32, #tpu.memory_space<vmem>>, vector<1x1x1x32x16xf32>
    %41 = vector.shape_cast %40 : vector<1x1x1x32x16xf32> to vector<32x16xf32>
    %42 = arith.truncf %33 : vector<8x32xf32> to vector<8x32xbf16>
    %43 = arith.truncf %41 : vector<32x16xf32> to vector<32x16xbf16>
    %cst_25 = arith.constant dense<0.000000e+00> : vector<8x16xf32>
    %44 = tpu.matmul %42, %43, %cst_25 {dimension_numbers = #tpu.dot_dimension_numbers<[1], [0], [0], [1], [0, 0, 1, 1], [], []>} : vector<8x32xbf16>, vector<32x16xbf16>, vector<8x16xf32> -> vector<8x16xf32>
    %c0_26 = arith.constant 0 : index
    %c2 = arith.constant 2 : index
    %c0_27 = arith.constant 0 : index
    %c0_28 = arith.constant 0 : index
    %c0_29 = arith.constant 0 : index
    %45 = vector.load %arg5[%c0_26, %c2, %c0_27, %c0_28, %c0_29] : memref<1x3x2x32x16xf32, #tpu.memory_space<vmem>>, vector<1x1x1x32x16xf32>
    %46 = vector.shape_cast %45 : vector<1x1x1x32x16xf32> to vector<32x16xf32>
    %47 = arith.truncf %33 : vector<8x32xf32> to vector<8x32xbf16>
    %48 = arith.truncf %46 : vector<32x16xf32> to vector<32x16xbf16>
    %cst_30 = arith.constant dense<0.000000e+00> : vector<8x16xf32>
    %49 = tpu.matmul %47, %48, %cst_30 {dimension_numbers = #tpu.dot_dimension_numbers<[1], [0], [0], [1], [0, 0, 1, 1], [], []>} : vector<8x32xbf16>, vector<32x16xbf16>, vector<8x16xf32> -> vector<8x16xf32>
    %50 = arith.truncf %39 : vector<8x16xf32> to vector<8x16xbf16>
    %51 = arith.truncf %44 : vector<8x16xf32> to vector<8x16xbf16>
    %cst_31 = arith.constant dense<0.000000e+00> : vector<8x8xf32>
    %52 = tpu.matmul %50, %51, %cst_31 {dimension_numbers = #tpu.dot_dimension_numbers<[1], [1], [0], [0], [0, 0, 1, 0], [], []>} : vector<8x16xbf16>, vector<8x16xbf16>, vector<8x8xf32> -> vector<8x8xf32>
    %cst_32 = arith.constant 2.500000e-01 : f32
    %53 = vector.broadcast %cst_32 : f32 to vector<8x8xf32>
    %54 = arith.mulf %52, %53 : vector<8x8xf32>
    %cst_33 = arith.constant dense<0xFF800000> : vector<8xf32>
    %55 = vector.multi_reduction <maximumf>, %54, %cst_33 [1] : vector<8x8xf32> to vector<8xf32>
    %56 = vector.shape_cast %55 : vector<8xf32> to vector<8x1xf32>
    %57 = vector.broadcast %56 : vector<8x1xf32> to vector<8x8xf32>
    %58 = arith.subf %54, %57 : vector<8x8xf32>
    %59 = math.exp %58 : vector<8x8xf32>
    %cst_34 = arith.constant dense<0.000000e+00> : vector<8xf32>
    %60 = vector.multi_reduction <add>, %59, %cst_34 [1] : vector<8x8xf32> to vector<8xf32>
    %61 = vector.shape_cast %60 : vector<8xf32> to vector<8x1xf32>
    %62 = vector.broadcast %61 : vector<8x1xf32> to vector<8x8xf32>
    %63 = arith.divf %59, %62 : vector<8x8xf32>
    %64 = arith.truncf %63 : vector<8x8xf32> to vector<8x8xbf16>
    %65 = arith.truncf %49 : vector<8x16xf32> to vector<8x16xbf16>
    %cst_35 = arith.constant dense<0.000000e+00> : vector<8x16xf32>
    %66 = tpu.matmul %64, %65, %cst_35 {dimension_numbers = #tpu.dot_dimension_numbers<[1], [0], [0], [1], [0, 0, 1, 1], [], []>} : vector<8x8xbf16>, vector<8x16xbf16>, vector<8x16xf32> -> vector<8x16xf32>
    %c0_36 = arith.constant 0 : index
    %c0_37 = arith.constant 0 : index
    %c0_38 = arith.constant 0 : index
    %c0_39 = arith.constant 0 : index
    %67 = vector.load %arg6[%c0_36, %c0_37, %c0_38, %c0_39] : memref<1x2x16x32xf32, #tpu.memory_space<vmem>>, vector<1x1x16x32xf32>
    %68 = vector.shape_cast %67 : vector<1x1x16x32xf32> to vector<16x32xf32>
    %69 = arith.truncf %66 : vector<8x16xf32> to vector<8x16xbf16>
    %70 = arith.truncf %68 : vector<16x32xf32> to vector<16x32xbf16>
    %cst_40 = arith.constant dense<0.000000e+00> : vector<8x32xf32>
    %71 = tpu.matmul %69, %70, %cst_40 {dimension_numbers = #tpu.dot_dimension_numbers<[1], [0], [0], [1], [0, 0, 1, 1], [], []>} : vector<8x16xbf16>, vector<16x32xbf16>, vector<8x32xf32> -> vector<8x32xf32>
    %c0_41 = arith.constant 0 : index
    %c0_42 = arith.constant 0 : index
    %c1_43 = arith.constant 1 : index
    %c0_44 = arith.constant 0 : index
    %c0_45 = arith.constant 0 : index
    %72 = vector.load %arg5[%c0_41, %c0_42, %c1_43, %c0_44, %c0_45] : memref<1x3x2x32x16xf32, #tpu.memory_space<vmem>>, vector<1x1x1x32x16xf32>
    %73 = vector.shape_cast %72 : vector<1x1x1x32x16xf32> to vector<32x16xf32>
    %74 = arith.truncf %33 : vector<8x32xf32> to vector<8x32xbf16>
    %75 = arith.truncf %73 : vector<32x16xf32> to vector<32x16xbf16>
    %cst_46 = arith.constant dense<0.000000e+00> : vector<8x16xf32>
    %76 = tpu.matmul %74, %75, %cst_46 {dimension_numbers = #tpu.dot_dimension_numbers<[1], [0], [0], [1], [0, 0, 1, 1], [], []>} : vector<8x32xbf16>, vector<32x16xbf16>, vector<8x16xf32> -> vector<8x16xf32>
    %c0_47 = arith.constant 0 : index
    %c1_48 = arith.constant 1 : index
    %c1_49 = arith.constant 1 : index
    %c0_50 = arith.constant 0 : index
    %c0_51 = arith.constant 0 : index
    %77 = vector.load %arg5[%c0_47, %c1_48, %c1_49, %c0_50, %c0_51] : memref<1x3x2x32x16xf32, #tpu.memory_space<vmem>>, vector<1x1x1x32x16xf32>
    %78 = vector.shape_cast %77 : vector<1x1x1x32x16xf32> to vector<32x16xf32>
    %79 = arith.truncf %33 : vector<8x32xf32> to vector<8x32xbf16>
    %80 = arith.truncf %78 : vector<32x16xf32> to vector<32x16xbf16>
    %cst_52 = arith.constant dense<0.000000e+00> : vector<8x16xf32>
    %81 = tpu.matmul %79, %80, %cst_52 {dimension_numbers = #tpu.dot_dimension_numbers<[1], [0], [0], [1], [0, 0, 1, 1], [], []>} : vector<8x32xbf16>, vector<32x16xbf16>, vector<8x16xf32> -> vector<8x16xf32>
    %c0_53 = arith.constant 0 : index
    %c2_54 = arith.constant 2 : index
    %c1_55 = arith.constant 1 : index
    %c0_56 = arith.constant 0 : index
    %c0_57 = arith.constant 0 : index
    %82 = vector.load %arg5[%c0_53, %c2_54, %c1_55, %c0_56, %c0_57] : memref<1x3x2x32x16xf32, #tpu.memory_space<vmem>>, vector<1x1x1x32x16xf32>
    %83 = vector.shape_cast %82 : vector<1x1x1x32x16xf32> to vector<32x16xf32>
    %84 = arith.truncf %33 : vector<8x32xf32> to vector<8x32xbf16>
    %85 = arith.truncf %83 : vector<32x16xf32> to vector<32x16xbf16>
    %cst_58 = arith.constant dense<0.000000e+00> : vector<8x16xf32>
    %86 = tpu.matmul %84, %85, %cst_58 {dimension_numbers = #tpu.dot_dimension_numbers<[1], [0], [0], [1], [0, 0, 1, 1], [], []>} : vector<8x32xbf16>, vector<32x16xbf16>, vector<8x16xf32> -> vector<8x16xf32>
    %87 = arith.truncf %76 : vector<8x16xf32> to vector<8x16xbf16>
    %88 = arith.truncf %81 : vector<8x16xf32> to vector<8x16xbf16>
    %cst_59 = arith.constant dense<0.000000e+00> : vector<8x8xf32>
    %89 = tpu.matmul %87, %88, %cst_59 {dimension_numbers = #tpu.dot_dimension_numbers<[1], [1], [0], [0], [0, 0, 1, 0], [], []>} : vector<8x16xbf16>, vector<8x16xbf16>, vector<8x8xf32> -> vector<8x8xf32>
    %cst_60 = arith.constant 2.500000e-01 : f32
    %90 = vector.broadcast %cst_60 : f32 to vector<8x8xf32>
    %91 = arith.mulf %89, %90 : vector<8x8xf32>
    %cst_61 = arith.constant dense<0xFF800000> : vector<8xf32>
    %92 = vector.multi_reduction <maximumf>, %91, %cst_61 [1] : vector<8x8xf32> to vector<8xf32>
    %93 = vector.shape_cast %92 : vector<8xf32> to vector<8x1xf32>
    %94 = vector.broadcast %93 : vector<8x1xf32> to vector<8x8xf32>
    %95 = arith.subf %91, %94 : vector<8x8xf32>
    %96 = math.exp %95 : vector<8x8xf32>
    %cst_62 = arith.constant dense<0.000000e+00> : vector<8xf32>
    %97 = vector.multi_reduction <add>, %96, %cst_62 [1] : vector<8x8xf32> to vector<8xf32>
    %98 = vector.shape_cast %97 : vector<8xf32> to vector<8x1xf32>
    %99 = vector.broadcast %98 : vector<8x1xf32> to vector<8x8xf32>
    %100 = arith.divf %96, %99 : vector<8x8xf32>
    %101 = arith.truncf %100 : vector<8x8xf32> to vector<8x8xbf16>
    %102 = arith.truncf %86 : vector<8x16xf32> to vector<8x16xbf16>
    %cst_63 = arith.constant dense<0.000000e+00> : vector<8x16xf32>
    %103 = tpu.matmul %101, %102, %cst_63 {dimension_numbers = #tpu.dot_dimension_numbers<[1], [0], [0], [1], [0, 0, 1, 1], [], []>} : vector<8x8xbf16>, vector<8x16xbf16>, vector<8x16xf32> -> vector<8x16xf32>
    %c0_64 = arith.constant 0 : index
    %c1_65 = arith.constant 1 : index
    %c0_66 = arith.constant 0 : index
    %c0_67 = arith.constant 0 : index
    %104 = vector.load %arg6[%c0_64, %c1_65, %c0_66, %c0_67] : memref<1x2x16x32xf32, #tpu.memory_space<vmem>>, vector<1x1x16x32xf32>
    %105 = vector.shape_cast %104 : vector<1x1x16x32xf32> to vector<16x32xf32>
    %106 = arith.truncf %103 : vector<8x16xf32> to vector<8x16xbf16>
    %107 = arith.truncf %105 : vector<16x32xf32> to vector<16x32xbf16>
    %cst_68 = arith.constant dense<0.000000e+00> : vector<8x32xf32>
    %108 = tpu.matmul %106, %107, %cst_68 {dimension_numbers = #tpu.dot_dimension_numbers<[1], [0], [0], [1], [0, 0, 1, 1], [], []>} : vector<8x16xbf16>, vector<16x32xbf16>, vector<8x32xf32> -> vector<8x32xf32>
    %109 = arith.addf %71, %108 : vector<8x32xf32>
    %110 = vector.broadcast %34 : vector<1x32xf32> to vector<8x32xf32>
    %111 = arith.addf %109, %110 : vector<8x32xf32>
    %112 = arith.addf %3, %111 : vector<8x32xf32>
    %c0_69 = arith.constant 0 : index
    %c0_70 = arith.constant 0 : index
    %113 = vector.load %arg14[%c0_69, %c0_70] : memref<8x32xf32, #tpu.memory_space<vmem>>, vector<8x32xf32>
    tpu.vector_store %arg14[%c0_69, %c0_70], %112 {strides = array<i32>} : memref<8x32xf32, #tpu.memory_space<vmem>>, vector<8x32xf32>,
    %114 = vector.extract_strided_slice %7 {offsets = [2, 0], sizes = [1, 32], strides = [1, 1]} : vector<6x32xf32> to vector<1x32xf32>
    %115 = vector.extract_strided_slice %7 {offsets = [3, 0], sizes = [1, 32], strides = [1, 1]} : vector<6x32xf32> to vector<1x32xf32>
    %cst_71 = arith.constant dense<0.000000e+00> : vector<8xf32>
    %116 = vector.multi_reduction <add>, %112, %cst_71 [1] : vector<8x32xf32> to vector<8xf32>
    %117 = vector.shape_cast %116 : vector<8xf32> to vector<8x1xf32>
    %cst_72 = arith.constant 3.200000e+01 : f32
    %118 = vector.broadcast %cst_72 : f32 to vector<8x1xf32>
    %119 = arith.divf %117, %118 : vector<8x1xf32>
    %120 = vector.broadcast %119 : vector<8x1xf32> to vector<8x32xf32>
    %121 = arith.subf %112, %120 : vector<8x32xf32>
    %122 = arith.mulf %121, %121 : vector<8x32xf32>
    %cst_73 = arith.constant dense<0.000000e+00> : vector<8xf32>
    %123 = vector.multi_reduction <add>, %122, %cst_73 [1] : vector<8x32xf32> to vector<8xf32>
    %124 = vector.shape_cast %123 : vector<8xf32> to vector<8x1xf32>
    %cst_74 = arith.constant 3.200000e+01 : f32
    %125 = vector.broadcast %cst_74 : f32 to vector<8x1xf32>
    %126 = arith.divf %124, %125 : vector<8x1xf32>
    %127 = vector.broadcast %119 : vector<8x1xf32> to vector<8x32xf32>
    %128 = arith.subf %112, %127 : vector<8x32xf32>
    %cst_75 = arith.constant 9.99999974E-6 : f32
    %129 = vector.broadcast %cst_75 : f32 to vector<8x1xf32>
    %130 = arith.addf %126, %129 : vector<8x1xf32>
    %131 = math.rsqrt %130 : vector<8x1xf32>
    %132 = vector.broadcast %131 : vector<8x1xf32> to vector<8x32xf32>
    %133 = arith.mulf %128, %132 : vector<8x32xf32>
    %134 = vector.broadcast %114 : vector<1x32xf32> to vector<8x32xf32>
    %135 = arith.mulf %133, %134 : vector<8x32xf32>
    %136 = vector.broadcast %115 : vector<1x32xf32> to vector<8x32xf32>
    %137 = arith.addf %135, %136 : vector<8x32xf32>
    %138 = vector.extract_strided_slice %7 {offsets = [2, 0], sizes = [1, 32], strides = [1, 1]} : vector<6x32xf32> to vector<1x32xf32>
    %139 = vector.extract_strided_slice %7 {offsets = [3, 0], sizes = [1, 32], strides = [1, 1]} : vector<6x32xf32> to vector<1x32xf32>
    %cst_76 = arith.constant dense<0.000000e+00> : vector<12xf32>
    %140 = vector.multi_reduction <add>, %5, %cst_76 [1] : vector<12x32xf32> to vector<12xf32>
    %141 = vector.shape_cast %140 : vector<12xf32> to vector<12x1xf32>
    %cst_77 = arith.constant 3.200000e+01 : f32
    %142 = vector.broadcast %cst_77 : f32 to vector<12x1xf32>
    %143 = arith.divf %141, %142 : vector<12x1xf32>
    %144 = vector.broadcast %143 : vector<12x1xf32> to vector<12x32xf32>
    %145 = arith.subf %5, %144 : vector<12x32xf32>
    %146 = arith.mulf %145, %145 : vector<12x32xf32>
    %cst_78 = arith.constant dense<0.000000e+00> : vector<12xf32>
    %147 = vector.multi_reduction <add>, %146, %cst_78 [1] : vector<12x32xf32> to vector<12xf32>
    %148 = vector.shape_cast %147 : vector<12xf32> to vector<12x1xf32>
    %cst_79 = arith.constant 3.200000e+01 : f32
    %149 = vector.broadcast %cst_79 : f32 to vector<12x1xf32>
    %150 = arith.divf %148, %149 : vector<12x1xf32>
    %151 = vector.broadcast %143 : vector<12x1xf32> to vector<12x32xf32>
    %152 = arith.subf %5, %151 : vector<12x32xf32>
    %cst_80 = arith.constant 9.99999974E-6 : f32
    %153 = vector.broadcast %cst_80 : f32 to vector<12x1xf32>
    %154 = arith.addf %150, %153 : vector<12x1xf32>
    %155 = math.rsqrt %154 : vector<12x1xf32>
    %156 = vector.broadcast %155 : vector<12x1xf32> to vector<12x32xf32>
    %157 = arith.mulf %152, %156 : vector<12x32xf32>
    %158 = vector.broadcast %138 : vector<1x32xf32> to vector<12x32xf32>
    %159 = arith.mulf %157, %158 : vector<12x32xf32>
    %160 = vector.broadcast %139 : vector<1x32xf32> to vector<12x32xf32>
    %161 = arith.addf %159, %160 : vector<12x32xf32>
    %162 = vector.extract_strided_slice %9 {offsets = [1, 0], sizes = [1, 32], strides = [1, 1]} : vector<3x32xf32> to vector<1x32xf32>
    %c0_81 = arith.constant 0 : index
    %c0_82 = arith.constant 0 : index
    %c0_83 = arith.constant 0 : index
    %c0_84 = arith.constant 0 : index
    %c0_85 = arith.constant 0 : index
    %163 = vector.load %arg7[%c0_81, %c0_82, %c0_83, %c0_84, %c0_85] : memref<1x3x2x32x16xf32, #tpu.memory_space<vmem>>, vector<1x1x1x32x16xf32>
    %164 = vector.shape_cast %163 : vector<1x1x1x32x16xf32> to vector<32x16xf32>
    %165 = arith.truncf %137 : vector<8x32xf32> to vector<8x32xbf16>
    %166 = arith.truncf %164 : vector<32x16xf32> to vector<32x16xbf16>
    %cst_86 = arith.constant dense<0.000000e+00> : vector<8x16xf32>
    %167 = tpu.matmul %165, %166, %cst_86 {dimension_numbers = #tpu.dot_dimension_numbers<[1], [0], [0], [1], [0, 0, 1, 1], [], []>} : vector<8x32xbf16>, vector<32x16xbf16>, vector<8x16xf32> -> vector<8x16xf32>
    %c0_87 = arith.constant 0 : index
    %c1_88 = arith.constant 1 : index
    %c0_89 = arith.constant 0 : index
    %c0_90 = arith.constant 0 : index
    %c0_91 = arith.constant 0 : index
    %168 = vector.load %arg7[%c0_87, %c1_88, %c0_89, %c0_90, %c0_91] : memref<1x3x2x32x16xf32, #tpu.memory_space<vmem>>, vector<1x1x1x32x16xf32>
    %169 = vector.shape_cast %168 : vector<1x1x1x32x16xf32> to vector<32x16xf32>
    %170 = arith.truncf %161 : vector<12x32xf32> to vector<12x32xbf16>
    %171 = arith.truncf %169 : vector<32x16xf32> to vector<32x16xbf16>
    %cst_92 = arith.constant dense<0.000000e+00> : vector<12x16xf32>
    %172 = tpu.matmul %170, %171, %cst_92 {dimension_numbers = #tpu.dot_dimension_numbers<[1], [0], [0], [1], [0, 0, 1, 1], [], []>} : vector<12x32xbf16>, vector<32x16xbf16>, vector<12x16xf32> -> vector<12x16xf32>
    %c0_93 = arith.constant 0 : index
    %c2_94 = arith.constant 2 : index
    %c0_95 = arith.constant 0 : index
    %c0_96 = arith.constant 0 : index
    %c0_97 = arith.constant 0 : index
    %173 = vector.load %arg7[%c0_93, %c2_94, %c0_95, %c0_96, %c0_97] : memref<1x3x2x32x16xf32, #tpu.memory_space<vmem>>, vector<1x1x1x32x16xf32>
    %174 = vector.shape_cast %173 : vector<1x1x1x32x16xf32> to vector<32x16xf32>
    %175 = arith.truncf %161 : vector<12x32xf32> to vector<12x32xbf16>
    %176 = arith.truncf %174 : vector<32x16xf32> to vector<32x16xbf16>
    %cst_98 = arith.constant dense<0.000000e+00> : vector<12x16xf32>
    %177 = tpu.matmul %175, %176, %cst_98 {dimension_numbers = #tpu.dot_dimension_numbers<[1], [0], [0], [1], [0, 0, 1, 1], [], []>} : vector<12x32xbf16>, vector<32x16xbf16>, vector<12x16xf32> -> vector<12x16xf32>
    %178 = arith.truncf %167 : vector<8x16xf32> to vector<8x16xbf16>
    %179 = arith.truncf %172 : vector<12x16xf32> to vector<12x16xbf16>
    %cst_99 = arith.constant dense<0.000000e+00> : vector<8x12xf32>
    %180 = tpu.matmul %178, %179, %cst_99 {dimension_numbers = #tpu.dot_dimension_numbers<[1], [1], [0], [0], [0, 0, 1, 0], [], []>} : vector<8x16xbf16>, vector<12x16xbf16>, vector<8x12xf32> -> vector<8x12xf32>
    %cst_100 = arith.constant 2.500000e-01 : f32
    %181 = vector.broadcast %cst_100 : f32 to vector<8x12xf32>
    %182 = arith.mulf %180, %181 : vector<8x12xf32>
    %cst_101 = arith.constant dense<0xFF800000> : vector<8xf32>
    %183 = vector.multi_reduction <maximumf>, %182, %cst_101 [1] : vector<8x12xf32> to vector<8xf32>
    %184 = vector.shape_cast %183 : vector<8xf32> to vector<8x1xf32>
    %185 = vector.broadcast %184 : vector<8x1xf32> to vector<8x12xf32>
    %186 = arith.subf %182, %185 : vector<8x12xf32>
    %187 = math.exp %186 : vector<8x12xf32>
    %cst_102 = arith.constant dense<0.000000e+00> : vector<8xf32>
    %188 = vector.multi_reduction <add>, %187, %cst_102 [1] : vector<8x12xf32> to vector<8xf32>
    %189 = vector.shape_cast %188 : vector<8xf32> to vector<8x1xf32>
    %190 = vector.broadcast %189 : vector<8x1xf32> to vector<8x12xf32>
    %191 = arith.divf %187, %190 : vector<8x12xf32>
    %192 = arith.truncf %191 : vector<8x12xf32> to vector<8x12xbf16>
    %193 = arith.truncf %177 : vector<12x16xf32> to vector<12x16xbf16>
    %cst_103 = arith.constant dense<0.000000e+00> : vector<8x16xf32>
    %194 = tpu.matmul %192, %193, %cst_103 {dimension_numbers = #tpu.dot_dimension_numbers<[1], [0], [0], [1], [0, 0, 1, 1], [], []>} : vector<8x12xbf16>, vector<12x16xbf16>, vector<8x16xf32> -> vector<8x16xf32>
    %c0_104 = arith.constant 0 : index
    %c0_105 = arith.constant 0 : index
    %c0_106 = arith.constant 0 : index
    %c0_107 = arith.constant 0 : index
    %195 = vector.load %arg8[%c0_104, %c0_105, %c0_106, %c0_107] : memref<1x2x16x32xf32, #tpu.memory_space<vmem>>, vector<1x1x16x32xf32>
    %196 = vector.shape_cast %195 : vector<1x1x16x32xf32> to vector<16x32xf32>
    %197 = arith.truncf %194 : vector<8x16xf32> to vector<8x16xbf16>
    %198 = arith.truncf %196 : vector<16x32xf32> to vector<16x32xbf16>
    %cst_108 = arith.constant dense<0.000000e+00> : vector<8x32xf32>
    %199 = tpu.matmul %197, %198, %cst_108 {dimension_numbers = #tpu.dot_dimension_numbers<[1], [0], [0], [1], [0, 0, 1, 1], [], []>} : vector<8x16xbf16>, vector<16x32xbf16>, vector<8x32xf32> -> vector<8x32xf32>
    %c0_109 = arith.constant 0 : index
    %c0_110 = arith.constant 0 : index
    %c1_111 = arith.constant 1 : index
    %c0_112 = arith.constant 0 : index
    %c0_113 = arith.constant 0 : index
    %200 = vector.load %arg7[%c0_109, %c0_110, %c1_111, %c0_112, %c0_113] : memref<1x3x2x32x16xf32, #tpu.memory_space<vmem>>, vector<1x1x1x32x16xf32>
    %201 = vector.shape_cast %200 : vector<1x1x1x32x16xf32> to vector<32x16xf32>
    %202 = arith.truncf %137 : vector<8x32xf32> to vector<8x32xbf16>
    %203 = arith.truncf %201 : vector<32x16xf32> to vector<32x16xbf16>
    %cst_114 = arith.constant dense<0.000000e+00> : vector<8x16xf32>
    %204 = tpu.matmul %202, %203, %cst_114 {dimension_numbers = #tpu.dot_dimension_numbers<[1], [0], [0], [1], [0, 0, 1, 1], [], []>} : vector<8x32xbf16>, vector<32x16xbf16>, vector<8x16xf32> -> vector<8x16xf32>
    %c0_115 = arith.constant 0 : index
    %c1_116 = arith.constant 1 : index
    %c1_117 = arith.constant 1 : index
    %c0_118 = arith.constant 0 : index
    %c0_119 = arith.constant 0 : index
    %205 = vector.load %arg7[%c0_115, %c1_116, %c1_117, %c0_118, %c0_119] : memref<1x3x2x32x16xf32, #tpu.memory_space<vmem>>, vector<1x1x1x32x16xf32>
    %206 = vector.shape_cast %205 : vector<1x1x1x32x16xf32> to vector<32x16xf32>
    %207 = arith.truncf %161 : vector<12x32xf32> to vector<12x32xbf16>
    %208 = arith.truncf %206 : vector<32x16xf32> to vector<32x16xbf16>
    %cst_120 = arith.constant dense<0.000000e+00> : vector<12x16xf32>
    %209 = tpu.matmul %207, %208, %cst_120 {dimension_numbers = #tpu.dot_dimension_numbers<[1], [0], [0], [1], [0, 0, 1, 1], [], []>} : vector<12x32xbf16>, vector<32x16xbf16>, vector<12x16xf32> -> vector<12x16xf32>
    %c0_121 = arith.constant 0 : index
    %c2_122 = arith.constant 2 : index
    %c1_123 = arith.constant 1 : index
    %c0_124 = arith.constant 0 : index
    %c0_125 = arith.constant 0 : index
    %210 = vector.load %arg7[%c0_121, %c2_122, %c1_123, %c0_124, %c0_125] : memref<1x3x2x32x16xf32, #tpu.memory_space<vmem>>, vector<1x1x1x32x16xf32>
    %211 = vector.shape_cast %210 : vector<1x1x1x32x16xf32> to vector<32x16xf32>
    %212 = arith.truncf %161 : vector<12x32xf32> to vector<12x32xbf16>
    %213 = arith.truncf %211 : vector<32x16xf32> to vector<32x16xbf16>
    %cst_126 = arith.constant dense<0.000000e+00> : vector<12x16xf32>
    %214 = tpu.matmul %212, %213, %cst_126 {dimension_numbers = #tpu.dot_dimension_numbers<[1], [0], [0], [1], [0, 0, 1, 1], [], []>} : vector<12x32xbf16>, vector<32x16xbf16>, vector<12x16xf32> -> vector<12x16xf32>
    %215 = arith.truncf %204 : vector<8x16xf32> to vector<8x16xbf16>
    %216 = arith.truncf %209 : vector<12x16xf32> to vector<12x16xbf16>
    %cst_127 = arith.constant dense<0.000000e+00> : vector<8x12xf32>
    %217 = tpu.matmul %215, %216, %cst_127 {dimension_numbers = #tpu.dot_dimension_numbers<[1], [1], [0], [0], [0, 0, 1, 0], [], []>} : vector<8x16xbf16>, vector<12x16xbf16>, vector<8x12xf32> -> vector<8x12xf32>
    %cst_128 = arith.constant 2.500000e-01 : f32
    %218 = vector.broadcast %cst_128 : f32 to vector<8x12xf32>
    %219 = arith.mulf %217, %218 : vector<8x12xf32>
    %cst_129 = arith.constant dense<0xFF800000> : vector<8xf32>
    %220 = vector.multi_reduction <maximumf>, %219, %cst_129 [1] : vector<8x12xf32> to vector<8xf32>
    %221 = vector.shape_cast %220 : vector<8xf32> to vector<8x1xf32>
    %222 = vector.broadcast %221 : vector<8x1xf32> to vector<8x12xf32>
    %223 = arith.subf %219, %222 : vector<8x12xf32>
    %224 = math.exp %223 : vector<8x12xf32>
    %cst_130 = arith.constant dense<0.000000e+00> : vector<8xf32>
    %225 = vector.multi_reduction <add>, %224, %cst_130 [1] : vector<8x12xf32> to vector<8xf32>
    %226 = vector.shape_cast %225 : vector<8xf32> to vector<8x1xf32>
    %227 = vector.broadcast %226 : vector<8x1xf32> to vector<8x12xf32>
    %228 = arith.divf %224, %227 : vector<8x12xf32>
    %229 = arith.truncf %228 : vector<8x12xf32> to vector<8x12xbf16>
    %230 = arith.truncf %214 : vector<12x16xf32> to vector<12x16xbf16>
    %cst_131 = arith.constant dense<0.000000e+00> : vector<8x16xf32>
    %231 = tpu.matmul %229, %230, %cst_131 {dimension_numbers = #tpu.dot_dimension_numbers<[1], [0], [0], [1], [0, 0, 1, 1], [], []>} : vector<8x12xbf16>, vector<12x16xbf16>, vector<8x16xf32> -> vector<8x16xf32>
    %c0_132 = arith.constant 0 : index
    %c1_133 = arith.constant 1 : index
    %c0_134 = arith.constant 0 : index
    %c0_135 = arith.constant 0 : index
    %232 = vector.load %arg8[%c0_132, %c1_133, %c0_134, %c0_135] : memref<1x2x16x32xf32, #tpu.memory_space<vmem>>, vector<1x1x16x32xf32>
    %233 = vector.shape_cast %232 : vector<1x1x16x32xf32> to vector<16x32xf32>
    %234 = arith.truncf %231 : vector<8x16xf32> to vector<8x16xbf16>
    %235 = arith.truncf %233 : vector<16x32xf32> to vector<16x32xbf16>
    %cst_136 = arith.constant dense<0.000000e+00> : vector<8x32xf32>
    %236 = tpu.matmul %234, %235, %cst_136 {dimension_numbers = #tpu.dot_dimension_numbers<[1], [0], [0], [1], [0, 0, 1, 1], [], []>} : vector<8x16xbf16>, vector<16x32xbf16>, vector<8x32xf32> -> vector<8x32xf32>
    %237 = arith.addf %199, %236 : vector<8x32xf32>
    %238 = vector.broadcast %162 : vector<1x32xf32> to vector<8x32xf32>
    %239 = arith.addf %237, %238 : vector<8x32xf32>
    %240 = arith.addf %112, %239 : vector<8x32xf32>
    %241 = vector.extract_strided_slice %7 {offsets = [4, 0], sizes = [1, 32], strides = [1, 1]} : vector<6x32xf32> to vector<1x32xf32>
    %242 = vector.extract_strided_slice %7 {offsets = [5, 0], sizes = [1, 32], strides = [1, 1]} : vector<6x32xf32> to vector<1x32xf32>
    %cst_137 = arith.constant dense<0.000000e+00> : vector<8xf32>
    %243 = vector.multi_reduction <add>, %240, %cst_137 [1] : vector<8x32xf32> to vector<8xf32>
    %244 = vector.shape_cast %243 : vector<8xf32> to vector<8x1xf32>
    %cst_138 = arith.constant 3.200000e+01 : f32
    %245 = vector.broadcast %cst_138 : f32 to vector<8x1xf32>
    %246 = arith.divf %244, %245 : vector<8x1xf32>
    %247 = vector.broadcast %246 : vector<8x1xf32> to vector<8x32xf32>
    %248 = arith.subf %240, %247 : vector<8x32xf32>
    %249 = arith.mulf %248, %248 : vector<8x32xf32>
    %cst_139 = arith.constant dense<0.000000e+00> : vector<8xf32>
    %250 = vector.multi_reduction <add>, %249, %cst_139 [1] : vector<8x32xf32> to vector<8xf32>
    %251 = vector.shape_cast %250 : vector<8xf32> to vector<8x1xf32>
    %cst_140 = arith.constant 3.200000e+01 : f32
    %252 = vector.broadcast %cst_140 : f32 to vector<8x1xf32>
    %253 = arith.divf %251, %252 : vector<8x1xf32>
    %254 = vector.broadcast %246 : vector<8x1xf32> to vector<8x32xf32>
    %255 = arith.subf %240, %254 : vector<8x32xf32>
    %cst_141 = arith.constant 9.99999974E-6 : f32
    %256 = vector.broadcast %cst_141 : f32 to vector<8x1xf32>
    %257 = arith.addf %253, %256 : vector<8x1xf32>
    %258 = math.rsqrt %257 : vector<8x1xf32>
    %259 = vector.broadcast %258 : vector<8x1xf32> to vector<8x32xf32>
    %260 = arith.mulf %255, %259 : vector<8x32xf32>
    %261 = vector.broadcast %241 : vector<1x32xf32> to vector<8x32xf32>
    %262 = arith.mulf %260, %261 : vector<8x32xf32>
    %263 = vector.broadcast %242 : vector<1x32xf32> to vector<8x32xf32>
    %264 = arith.addf %262, %263 : vector<8x32xf32>
    %c0_142 = arith.constant 0 : index
    %c0_143 = arith.constant 0 : index
    %c0_144 = arith.constant 0 : index
    %265 = vector.load %arg9[%c0_142, %c0_143, %c0_144] : memref<1x32x128xf32, #tpu.memory_space<vmem>>, vector<1x32x128xf32>
    %266 = vector.shape_cast %265 : vector<1x32x128xf32> to vector<32x128xf32>
    %267 = arith.truncf %264 : vector<8x32xf32> to vector<8x32xbf16>
    %268 = arith.truncf %266 : vector<32x128xf32> to vector<32x128xbf16>
    %cst_145 = arith.constant dense<0.000000e+00> : vector<8x128xf32>
    %269 = tpu.matmul %267, %268, %cst_145 {dimension_numbers = #tpu.dot_dimension_numbers<[1], [0], [0], [1], [0, 0, 1, 1], [], []>} : vector<8x32xbf16>, vector<32x128xbf16>, vector<8x128xf32> -> vector<8x128xf32>
    %c0_146 = arith.constant 0 : index
    %c0_147 = arith.constant 0 : index
    %c0_148 = arith.constant 0 : index
    %270 = vector.load %arg10[%c0_146, %c0_147, %c0_148] : memref<1x1x128xf32, #tpu.memory_space<vmem>>, vector<1x1x128xf32>
    %271 = vector.shape_cast %270 : vector<1x1x128xf32> to vector<1x128xf32>
    %272 = vector.broadcast %271 : vector<1x128xf32> to vector<8x128xf32>
    %273 = arith.addf %269, %272 : vector<8x128xf32>
    %cst_149 = arith.constant 0.000000e+00 : f32
    %274 = vector.broadcast %cst_149 : f32 to vector<8x128xf32>
    %275 = arith.maximumf %273, %274 : vector<8x128xf32>
    %c0_150 = arith.constant 0 : index
    %c0_151 = arith.constant 0 : index
    %c0_152 = arith.constant 0 : index
    %276 = vector.load %arg11[%c0_150, %c0_151, %c0_152] : memref<1x128x32xf32, #tpu.memory_space<vmem>>, vector<1x128x32xf32>
    %277 = vector.shape_cast %276 : vector<1x128x32xf32> to vector<128x32xf32>
    %278 = arith.truncf %275 : vector<8x128xf32> to vector<8x128xbf16>
    %279 = arith.truncf %277 : vector<128x32xf32> to vector<128x32xbf16>
    %cst_153 = arith.constant dense<0.000000e+00> : vector<8x32xf32>
    %280 = tpu.matmul %278, %279, %cst_153 {dimension_numbers = #tpu.dot_dimension_numbers<[1], [0], [0], [1], [0, 0, 1, 1], [], []>} : vector<8x128xbf16>, vector<128x32xbf16>, vector<8x32xf32> -> vector<8x32xf32>
    %281 = arith.addf %240, %280 : vector<8x32xf32>
    %282 = vector.extract_strided_slice %9 {offsets = [2, 0], sizes = [1, 32], strides = [1, 1]} : vector<3x32xf32> to vector<1x32xf32>
    %283 = vector.broadcast %282 : vector<1x32xf32> to vector<8x32xf32>
    %284 = arith.addf %281, %283 : vector<8x32xf32>
    %c0_154 = arith.constant 0 : index
    %c0_155 = arith.constant 0 : index
    %c0_156 = arith.constant 0 : index
    %285 = vector.load %arg13[%c0_154, %c0_155, %c0_156] : memref<1x8x32xf32, #tpu.memory_space<vmem>>, vector<1x8x32xf32>
    %286 = vector.shape_cast %285 : vector<1x8x32xf32> to vector<8x32xf32>
    %287 = vector.shape_cast %284 : vector<8x32xf32> to vector<1x8x32xf32>
    tpu.vector_store %arg13[%c0_154, %c0_155, %c0_156], %287 {strides = array<i32>} : memref<1x8x32xf32, #tpu.memory_space<vmem>>, vector<1x8x32xf32>,
    return
  }
  func.func @transform_0(%arg0: i32, %arg1: i32) -> (i32, i32, i32) {
    %c0_i32 = arith.constant 0 : i32
    %c0_i32_0 = arith.constant 0 : i32
    %c0_i32_1 = arith.constant 0 : i32
    return %arg0, %c0_i32, %c0_i32_0 : i32, i32, i32
  }
  func.func @transform_1(%arg0: i32, %arg1: i32) -> (i32, i32, i32) {
    %c0_i32 = arith.constant 0 : i32
    %c0_i32_0 = arith.constant 0 : i32
    %c0_i32_1 = arith.constant 0 : i32
    return %arg0, %c0_i32, %c0_i32_0 : i32, i32, i32
  }
  func.func @transform_2(%arg0: i32, %arg1: i32) -> (i32, i32, i32) {
    %c0_i32 = arith.constant 0 : i32
    %c0_i32_0 = arith.constant 0 : i32
    %c0_i32_1 = arith.constant 0 : i32
    return %arg1, %c0_i32, %c0_i32_0 : i32, i32, i32
  }
  func.func @transform_3(%arg0: i32, %arg1: i32) -> (i32, i32, i32, i32, i32) {
    %c0_i32 = arith.constant 0 : i32
    %c0_i32_0 = arith.constant 0 : i32
    %c0_i32_1 = arith.constant 0 : i32
    %c0_i32_2 = arith.constant 0 : i32
    %c0_i32_3 = arith.constant 0 : i32
    return %arg1, %c0_i32, %c0_i32_0, %c0_i32_1, %c0_i32_2 : i32, i32, i32, i32, i32
  }
  func.func @transform_4(%arg0: i32, %arg1: i32) -> (i32, i32, i32, i32) {
    %c0_i32 = arith.constant 0 : i32
    %c0_i32_0 = arith.constant 0 : i32
    %c0_i32_1 = arith.constant 0 : i32
    %c0_i32_2 = arith.constant 0 : i32
    return %arg1, %c0_i32, %c0_i32_0, %c0_i32_1 : i32, i32, i32, i32
  }
  func.func @transform_5(%arg0: i32, %arg1: i32) -> (i32, i32, i32, i32, i32) {
    %c0_i32 = arith.constant 0 : i32
    %c0_i32_0 = arith.constant 0 : i32
    %c0_i32_1 = arith.constant 0 : i32
    %c0_i32_2 = arith.constant 0 : i32
    %c0_i32_3 = arith.constant 0 : i32
    return %arg1, %c0_i32, %c0_i32_0, %c0_i32_1, %c0_i32_2 : i32, i32, i32, i32, i32
  }
  func.func @transform_6(%arg0: i32, %arg1: i32) -> (i32, i32, i32, i32) {
    %c0_i32 = arith.constant 0 : i32
    %c0_i32_0 = arith.constant 0 : i32
    %c0_i32_1 = arith.constant 0 : i32
    %c0_i32_2 = arith.constant 0 : i32
    return %arg1, %c0_i32, %c0_i32_0, %c0_i32_1 : i32, i32, i32, i32
  }
  func.func @transform_7(%arg0: i32, %arg1: i32) -> (i32, i32, i32) {
    %c0_i32 = arith.constant 0 : i32
    %c0_i32_0 = arith.constant 0 : i32
    %c0_i32_1 = arith.constant 0 : i32
    return %arg1, %c0_i32, %c0_i32_0 : i32, i32, i32
  }
  func.func @transform_8(%arg0: i32, %arg1: i32) -> (i32, i32, i32) {
    %c0_i32 = arith.constant 0 : i32
    %c0_i32_0 = arith.constant 0 : i32
    %c0_i32_1 = arith.constant 0 : i32
    return %arg1, %c0_i32, %c0_i32_0 : i32, i32, i32
  }
  func.func @transform_9(%arg0: i32, %arg1: i32) -> (i32, i32, i32) {
    %c0_i32 = arith.constant 0 : i32
    %c0_i32_0 = arith.constant 0 : i32
    %c0_i32_1 = arith.constant 0 : i32
    return %arg1, %c0_i32, %c0_i32_0 : i32, i32, i32
  }
  func.func @transform_10(%arg0: i32, %arg1: i32) -> (i32, i32, i32) {
    %c0_i32 = arith.constant 0 : i32
    %c0_i32_0 = arith.constant 0 : i32
    %c0_i32_1 = arith.constant 0 : i32
    return %arg1, %c0_i32, %c0_i32_0 : i32, i32, i32
  }
  func.func @transform_11(%arg0: i32, %arg1: i32) -> (i32, i32, i32) {
    %c0_i32 = arith.constant 0 : i32
    %c0_i32_0 = arith.constant 0 : i32
    %c0_i32_1 = arith.constant 0 : i32
    return %arg0, %c0_i32, %c0_i32_0 : i32, i32, i32
  }
}

</mosaic_0001>

<llo_original>
// kernel: decoder_forward.1
$region0: #{decoder_forward.1}
  #allocation0 [shape = 'u32[]', space=smem, size = 0x4, offset = 0x4, fixed_abs, tag = 'smem constant byte address 0x4 - core index']
  #allocation1 [shape = 'u32[144,128]{1,0:T(1,128)}', space=vmem, size = 0x12000, scoped, tag = 'internal scratch']
  #allocation2 [shape = 'f32[8,32]{1,0:T(8,128)}', space=vmem, size = 0x1000, scoped, tag = 'scratch operand']
  %s0 = inlined_call_operand.vmem [shape: f32[2,8,32], index: 0, kind: input, shape index: {}]
  %s1 = inlined_call_operand.vmem [shape: f32[2,12,32], index: 1, kind: input, shape index: {}]
  %s2 = inlined_call_operand.vmem [shape: f32[2,6,32], index: 2, kind: input, shape index: {}]
  %s3 = inlined_call_operand.vmem [shape: f32[2,3,2,32,16], index: 3, kind: input, shape index: {}]
  %s4 = inlined_call_operand.vmem [shape: f32[2,2,16,32], index: 4, kind: input, shape index: {}]
  %s5 = inlined_call_operand.vmem [shape: f32[2,3,2,32,16], index: 5, kind: input, shape index: {}]
  %s6 = inlined_call_operand.vmem [shape: f32[2,2,16,32], index: 6, kind: input, shape index: {}]
  %s7 = inlined_call_operand.vmem [shape: f32[2,32,128], index: 7, kind: input, shape index: {}]
  %s8 = inlined_call_operand.vmem [shape: f32[2,1,128], index: 8, kind: input, shape index: {}]
  %s9 = inlined_call_operand.vmem [shape: f32[2,128,32], index: 9, kind: input, shape index: {}]
  %s10 = inlined_call_operand.vmem [shape: f32[2,3,32], index: 10, kind: input, shape index: {}]
  %s11 = inlined_call_operand.hbm [shape: f32[2,8,32], index: 11, kind: output, shape index: {}]
  %s12 = sld [smem:[#allocation0]]
  $region81: #{decoder_forward.1} parent=0
    _
  %s14 = ssub.s32 1, %s12
  %s15 = scalar_select 0, %s14, %s12
  $region1: #{decoder_forward.1} parent=0
    #allocation3 [shape = 'u8[8192]{0}', space=vmem, size = 0x2000, scoped, tag = 'output window, operand 0']
    #allocation4 [shape = 's32[2]{0}', space=sflag, size = 0x8, scoped, tag = 'scoped memory for decoder_forward.1']
    %16 = vsyncpa [#allocation4], 0
    %s17 = scalar_lea.sflag [#allocation4], 1
    %18 = vsyncpa %s17, 0
    loop: start=0, step=1, limit=6
    $region2: #{decoder_forward.1} parent=1 // loop_pre_header
      _
    $region3: #{decoder_forward.1} parent=1 // loop_header
      %s20 = sphi 0, %s24
      %p21 = scmp.ge.s32.totalorder %s20, 6
      %s27 = sphi 0, %s39
      %s28 = sphi 0, %s35
      %s29 = sphi 0, %s27
      %s30 = sphi 0, %s28
      %s31 = sphi 0, %s29
      %s32 = sphi 0, %s30
      %s42 = sphi 0, %s44
      %s45 = sphi 0, %s42
      %s46 = sphi 0, %s45
      %s62 = sphi 0, %s46
      %s68 = sphi 0, %s70
      %s71 = sphi 0, %s68
      %s72 = sphi 0, %s71
      %s88 = sphi 0, %s72
      %s94 = sphi 0, %s96
      %s97 = sphi 0, %s94
      %s98 = sphi 0, %s97
      %s114 = sphi 0, %s98
      %s120 = sphi 0, %s122
      %s123 = sphi 0, %s120
      %s124 = sphi 0, %s123
      %s140 = sphi 0, %s124
      %s146 = sphi 0, %s148
      %s149 = sphi 0, %s146
      %s150 = sphi 0, %s149
      %s166 = sphi 0, %s150
      %s172 = sphi 0, %s174
      %s175 = sphi 0, %s172
      %s176 = sphi 0, %s175
      %s192 = sphi 0, %s176
      %s198 = sphi 0, %s200
      %s201 = sphi 0, %s198
      %s202 = sphi 0, %s201
      %s218 = sphi 0, %s202
      %s224 = sphi 0, %s226
      %s227 = sphi 0, %s224
      %s228 = sphi 0, %s227
      %s244 = sphi 0, %s228
      %s250 = sphi 0, %s252
      %s253 = sphi 0, %s250
      %s254 = sphi 0, %s253
      %s270 = sphi 0, %s254
      %s276 = sphi 0, %s278
      %s279 = sphi 0, %s276
      %s280 = sphi 0, %s279
      %s296 = sphi 0, %s280
      %s302 = sphi 0, %s304
      %s305 = sphi 0, %s302
      %s306 = sphi 0, %s305
      %s322 = sphi 0, %s306
      %s328 = sphi 0, %s330
      %s331 = sphi 0, %s328
      %s332 = sphi 0, %s331
      %s348 = sphi 0, %s332
    $region4: #{decoder_forward.1} parent=1 // loop_header_branch
      %23 = sbr.rel (%p21) target = $region8
    $region5: #{decoder_forward.1} parent=1 // loop_body
      %s25 = ssub.s32 %s20, 1
      %s26 = ssub.s32 %s20, 2
      %s33 = sadd.s32 1, %s28
      %p34 = scmp.ge.s32.totalorder %s33, 2
      %s35 = scalar_select %p34, 0, %s33
      %s36 = sadd.s32 1, %s27
      %s37 = scalar_select %p34, %s36, %s27
      %p38 = scmp.ge.s32.totalorder %s37, 2
      %s39 = scalar_select %p38, 0, %s37
      %s40 = ssub.s32 %s27, %s39
      %p41 = scmp.eq.s32.totalorder %s40, 0
      %s43 = sadd.s32 %s42, 1
      %s44 = scalar_select %p41, %s42, %s43
      %p47 = pneg %p41
      %p48 = scmp.eq.s32.totalorder %s20, 3
      %p49 = por %p47, %p48
      %p50 = scmp.ne.s32.totalorder %s42, %s45
      %p51 = scmp.eq.s32.totalorder %s20, 0
      %p52 = por %p50, %p51
      %p53 = scmp.ne.s32.totalorder %s42, %s45
      %p54 = scmp.eq.s32.totalorder %s25, 3
      %p55 = por %p53, %p54
      %p56 = scmp.ne.s32.totalorder %s45, %s46
      %p57 = scmp.eq.s32.totalorder %s25, 0
      %p58 = por %p56, %p57
      %p59 = scmp.ne.s32.totalorder %s45, %s46
      %p60 = scmp.eq.s32.totalorder %s26, 3
      %p61 = por %p59, %p60
      %p63 = scmp.ne.s32.totalorder %s46, %s62
      %p64 = scmp.eq.s32.totalorder %s26, 0
      %p65 = por %p63, %p64
      %s66 = ssub.s32 %s27, %s39
      %p67 = scmp.eq.s32.totalorder %s66, 0
      %s69 = sadd.s32 %s68, 1
      %s70 = scalar_select %p67, %s68, %s69
      %p73 = pneg %p67
      %p74 = scmp.eq.s32.totalorder %s20, 3
      %p75 = por %p73, %p74
      %p76 = scmp.ne.s32.totalorder %s68, %s71
      %p77 = scmp.eq.s32.totalorder %s20, 0
      %p78 = por %p76, %p77
      %p79 = scmp.ne.s32.totalorder %s68, %s71
      %p80 = scmp.eq.s32.totalorder %s25, 3
      %p81 = por %p79, %p80
      %p82 = scmp.ne.s32.totalorder %s71, %s72
      %p83 = scmp.eq.s32.totalorder %s25, 0
      %p84 = por %p82, %p83
      %p85 = scmp.ne.s32.totalorder %s71, %s72
      %p86 = scmp.eq.s32.totalorder %s26, 3
      %p87 = por %p85, %p86
      %p89 = scmp.ne.s32.totalorder %s72, %s88
      %p90 = scmp.eq.s32.totalorder %s26, 0
      %p91 = por %p89, %p90
      %s92 = ssub.s32 %s28, %s35
      %p93 = scmp.eq.s32.totalorder %s92, 0
      %s95 = sadd.s32 %s94, 1
      %s96 = scalar_select %p93, %s94, %s95
      %p99 = pneg %p93
      %p100 = scmp.eq.s32.totalorder %s20, 3
      %p101 = por %p99, %p100
      %p102 = scmp.ne.s32.totalorder %s94, %s97
      %p103 = scmp.eq.s32.totalorder %s20, 0
      %p104 = por %p102, %p103
      %p105 = scmp.ne.s32.totalorder %s94, %s97
      %p106 = scmp.eq.s32.totalorder %s25, 3
      %p107 = por %p105, %p106
      %p108 = scmp.ne.s32.totalorder %s97, %s98
      %p109 = scmp.eq.s32.totalorder %s25, 0
      %p110 = por %p108, %p109
      %p111 = scmp.ne.s32.totalorder %s97, %s98
      %p112 = scmp.eq.s32.totalorder %s26, 3
      %p113 = por %p111, %p112
      %p115 = scmp.ne.s32.totalorder %s98, %s114
      %p116 = scmp.eq.s32.totalorder %s26, 0
      %p117 = por %p115, %p116
      %s118 = ssub.s32 %s28, %s35
      %p119 = scmp.eq.s32.totalorder %s118, 0
      %s121 = sadd.s32 %s120, 1
      %s122 = scalar_select %p119, %s120, %s121
      %p125 = pneg %p119
      %p126 = scmp.eq.s32.totalorder %s20, 3
      %p127 = por %p125, %p126
      %p128 = scmp.ne.s32.totalorder %s120, %s123
      %p129 = scmp.eq.s32.totalorder %s20, 0
      %p130 = por %p128, %p129
      %p131 = scmp.ne.s32.totalorder %s120, %s123
      %p132 = scmp.eq.s32.totalorder %s25, 3
      %p133 = por %p131, %p132
      %p134 = scmp.ne.s32.totalorder %s123, %s124
      %p135 = scmp.eq.s32.totalorder %s25, 0
      %p136 = por %p134, %p135
      %p137 = scmp.ne.s32.totalorder %s123, %s124
      %p138 = scmp.eq.s32.totalorder %s26, 3
      %p139 = por %p137, %p138
      %p141 = scmp.ne.s32.totalorder %s124, %s140
      %p142 = scmp.eq.s32.totalorder %s26, 0
      %p143 = por %p141, %p142
      %s144 = ssub.s32 %s28, %s35
      %p145 = scmp.eq.s32.totalorder %s144, 0
      %s147 = sadd.s32 %s146, 1
      %s148 = scalar_select %p145, %s146, %s147
      %p151 = pneg %p145
      %p152 = scmp.eq.s32.totalorder %s20, 3
      %p153 = por %p151, %p152
      %p154 = scmp.ne.s32.totalorder %s146, %s149
      %p155 = scmp.eq.s32.totalorder %s20, 0
      %p156 = por %p154, %p155
      %p157 = scmp.ne.s32.totalorder %s146, %s149
      %p158 = scmp.eq.s32.totalorder %s25, 3
      %p159 = por %p157, %p158
      %p160 = scmp.ne.s32.totalorder %s149, %s150
      %p161 = scmp.eq.s32.totalorder %s25, 0
      %p162 = por %p160, %p161
      %p163 = scmp.ne.s32.totalorder %s149, %s150
      %p164 = scmp.eq.s32.totalorder %s26, 3
      %p165 = por %p163, %p164
      %p167 = scmp.ne.s32.totalorder %s150, %s166
      %p168 = scmp.eq.s32.totalorder %s26, 0
      %p169 = por %p167, %p168
      %s170 = ssub.s32 %s28, %s35
      %p171 = scmp.eq.s32.totalorder %s170, 0
      %s173 = sadd.s32 %s172, 1
      %s174 = scalar_select %p171, %s172, %s173
      %p177 = pneg %p171
      %p178 = scmp.eq.s32.totalorder %s20, 3
      %p179 = por %p177, %p178
      %p180 = scmp.ne.s32.totalorder %s172, %s175
      %p181 = scmp.eq.s32.totalorder %s20, 0
      %p182 = por %p180, %p181
      %p183 = scmp.ne.s32.totalorder %s172, %s175
      %p184 = scmp.eq.s32.totalorder %s25, 3
      %p185 = por %p183, %p184
      %p186 = scmp.ne.s32.totalorder %s175, %s176
      %p187 = scmp.eq.s32.totalorder %s25, 0
      %p188 = por %p186, %p187
      %p189 = scmp.ne.s32.totalorder %s175, %s176
      %p190 = scmp.eq.s32.totalorder %s26, 3
      %p191 = por %p189, %p190
      %p193 = scmp.ne.s32.totalorder %s176, %s192
      %p194 = scmp.eq.s32.totalorder %s26, 0
      %p195 = por %p193, %p194
      %s196 = ssub.s32 %s28, %s35
      %p197 = scmp.eq.s32.totalorder %s196, 0
      %s199 = sadd.s32 %s198, 1
      %s200 = scalar_select %p197, %s198, %s199
      %p203 = pneg %p197
      %p204 = scmp.eq.s32.totalorder %s20, 3
      %p205 = por %p203, %p204
      %p206 = scmp.ne.s32.totalorder %s198, %s201
      %p207 = scmp.eq.s32.totalorder %s20, 0
      %p208 = por %p206, %p207
      %p209 = scmp.ne.s32.totalorder %s198, %s201
      %p210 = scmp.eq.s32.totalorder %s25, 3
      %p211 = por %p209, %p210
      %p212 = scmp.ne.s32.totalorder %s201, %s202
      %p213 = scmp.eq.s32.totalorder %s25, 0
      %p214 = por %p212, %p213
      %p215 = scmp.ne.s32.totalorder %s201, %s202
      %p216 = scmp.eq.s32.totalorder %s26, 3
      %p217 = por %p215, %p216
      %p219 = scmp.ne.s32.totalorder %s202, %s218
      %p220 = scmp.eq.s32.totalorder %s26, 0
      %p221 = por %p219, %p220
      %s222 = ssub.s32 %s28, %s35
      %p223 = scmp.eq.s32.totalorder %s222, 0
      %s225 = sadd.s32 %s224, 1
      %s226 = scalar_select %p223, %s224, %s225
      %p229 = pneg %p223
      %p230 = scmp.eq.s32.totalorder %s20, 3
      %p231 = por %p229, %p230
      %p232 = scmp.ne.s32.totalorder %s224, %s227
      %p233 = scmp.eq.s32.totalorder %s20, 0
      %p234 = por %p232, %p233
      %p235 = scmp.ne.s32.totalorder %s224, %s227
      %p236 = scmp.eq.s32.totalorder %s25, 3
      %p237 = por %p235, %p236
      %p238 = scmp.ne.s32.totalorder %s227, %s228
      %p239 = scmp.eq.s32.totalorder %s25, 0
      %p240 = por %p238, %p239
      %p241 = scmp.ne.s32.totalorder %s227, %s228
      %p242 = scmp.eq.s32.totalorder %s26, 3
      %p243 = por %p241, %p242
      %p245 = scmp.ne.s32.totalorder %s228, %s244
      %p246 = scmp.eq.s32.totalorder %s26, 0
      %p247 = por %p245, %p246
      %s248 = ssub.s32 %s28, %s35
      %p249 = scmp.eq.s32.totalorder %s248, 0
      %s251 = sadd.s32 %s250, 1
      %s252 = scalar_select %p249, %s250, %s251
      %p255 = pneg %p249
      %p256 = scmp.eq.s32.totalorder %s20, 3
      %p257 = por %p255, %p256
      %p258 = scmp.ne.s32.totalorder %s250, %s253
      %p259 = scmp.eq.s32.totalorder %s20, 0
      %p260 = por %p258, %p259
      %p261 = scmp.ne.s32.totalorder %s250, %s253
      %p262 = scmp.eq.s32.totalorder %s25, 3
      %p263 = por %p261, %p262
      %p264 = scmp.ne.s32.totalorder %s253, %s254
      %p265 = scmp.eq.s32.totalorder %s25, 0
      %p266 = por %p264, %p265
      %p267 = scmp.ne.s32.totalorder %s253, %s254
      %p268 = scmp.eq.s32.totalorder %s26, 3
      %p269 = por %p267, %p268
      %p271 = scmp.ne.s32.totalorder %s254, %s270
      %p272 = scmp.eq.s32.totalorder %s26, 0
      %p273 = por %p271, %p272
      %s274 = ssub.s32 %s28, %s35
      %p275 = scmp.eq.s32.totalorder %s274, 0
      %s277 = sadd.s32 %s276, 1
      %s278 = scalar_select %p275, %s276, %s277
      %p281 = pneg %p275
      %p282 = scmp.eq.s32.totalorder %s20, 3
      %p283 = por %p281, %p282
      %p284 = scmp.ne.s32.totalorder %s276, %s279
      %p285 = scmp.eq.s32.totalorder %s20, 0
      %p286 = por %p284, %p285
      %p287 = scmp.ne.s32.totalorder %s276, %s279
      %p288 = scmp.eq.s32.totalorder %s25, 3
      %p289 = por %p287, %p288
      %p290 = scmp.ne.s32.totalorder %s279, %s280
      %p291 = scmp.eq.s32.totalorder %s25, 0
      %p292 = por %p290, %p291
      %p293 = scmp.ne.s32.totalorder %s279, %s280
      %p294 = scmp.eq.s32.totalorder %s26, 3
      %p295 = por %p293, %p294
      %p297 = scmp.ne.s32.totalorder %s280, %s296
      %p298 = scmp.eq.s32.totalorder %s26, 0
      %p299 = por %p297, %p298
      %s300 = ssub.s32 %s28, %s35
      %p301 = scmp.eq.s32.totalorder %s300, 0
      %s303 = sadd.s32 %s302, 1
      %s304 = scalar_select %p301, %s302, %s303
      %p307 = pneg %p301
      %p308 = scmp.eq.s32.totalorder %s20, 3
      %p309 = por %p307, %p308
      %p310 = scmp.ne.s32.totalorder %s302, %s305
      %p311 = scmp.eq.s32.totalorder %s20, 0
      %p312 = por %p310, %p311
      %p313 = scmp.ne.s32.totalorder %s302, %s305
      %p314 = scmp.eq.s32.totalorder %s25, 3
      %p315 = por %p313, %p314
      %p316 = scmp.ne.s32.totalorder %s305, %s306
      %p317 = scmp.eq.s32.totalorder %s25, 0
      %p318 = por %p316, %p317
      %p319 = scmp.ne.s32.totalorder %s305, %s306
      %p320 = scmp.eq.s32.totalorder %s26, 3
      %p321 = por %p319, %p320
      %p323 = scmp.ne.s32.totalorder %s306, %s322
      %p324 = scmp.eq.s32.totalorder %s26, 0
      %p325 = por %p323, %p324
      %s326 = ssub.s32 %s27, %s39
      %p327 = scmp.eq.s32.totalorder %s326, 0
      %s329 = sadd.s32 %s328, 1
      %s330 = scalar_select %p327, %s328, %s329
      %p333 = pneg %p327
      %p334 = scmp.eq.s32.totalorder %s20, 3
      %p335 = por %p333, %p334
      %p336 = scmp.ne.s32.totalorder %s328, %s331
      %p337 = scmp.eq.s32.totalorder %s20, 0
      %p338 = por %p336, %p337
      %p339 = scmp.ne.s32.totalorder %s328, %s331
      %p340 = scmp.eq.s32.totalorder %s25, 3
      %p341 = por %p339, %p340
      %p342 = scmp.ne.s32.totalorder %s331, %s332
      %p343 = scmp.eq.s32.totalorder %s25, 0
      %p344 = por %p342, %p343
      %p345 = scmp.ne.s32.totalorder %s331, %s332
      %p346 = scmp.eq.s32.totalorder %s26, 3
      %p347 = por %p345, %p346
      %p349 = scmp.ne.s32.totalorder %s332, %s348
      %p350 = scmp.eq.s32.totalorder %s26, 0
      %p351 = por %p349, %p350
      %p352 = scmp.le.s32.totalorder 1, %s20
      %p353 = scmp.lt.s32.totalorder %s20, 5
      %p354 = pnand %p352, %p353
      %p355 = pneg %p354
      // Predicated region
      $region9: #{decoder_forward.1} parent=5 // pred_check
        _
      $region10: #{decoder_forward.1} parent=5 // pred_check_branch
        %357 = sbr.rel (%p354) target = $region12
      $region11: #{decoder_forward.1} parent=5 // pred_region
        %s358 = ssub.s32 %s20, 1
      $region12: #{decoder_forward.1} parent=5 // pred_fallthru
        _
      %p359 = scmp.lt.s32.totalorder %s20, 4
      // Predicated region
      $region13: #{decoder_forward.1} parent=5 // pred_check
        %p360 = pneg %p359
      $region14: #{decoder_forward.1} parent=5 // pred_check_branch
        %362 = sbr.rel (%p360) target = $region16
      $region15: #{decoder_forward.1} parent=5 // pred_region
        // Predicated region
        $region17: #{decoder_forward.1} parent=15 // pred_check
          %p363 = pneg %p52
        $region18: #{decoder_forward.1} parent=15 // pred_check_branch
          %365 = sbr.rel (%p363) target = $region20
        $region19: #{decoder_forward.1} parent=15 // pred_region
          %p366 = scmp.lt.s32.totalorder %s27, 1
          %s367 = scalar_select %p366, %s27, 1
          %s368 = smul.addr %s367, 8
          %s369 = scalar_lea.vmem %s0, %s368
        $region20: #{decoder_forward.1} parent=15 // pred_fallthru
          _
        // Predicated region
        $region21: #{decoder_forward.1} parent=15 // pred_check
          %p370 = pneg %p78
        $region22: #{decoder_forward.1} parent=15 // pred_check_branch
          %372 = sbr.rel (%p370) target = $region24
        $region23: #{decoder_forward.1} parent=15 // pred_region
          %p373 = scmp.lt.s32.totalorder %s27, 1
          %s374 = scalar_select %p373, %s27, 1
          %s375 = smul.addr %s374, 2
          %s376 = smul.addr %s375, 8
          %s377 = scalar_lea.vmem %s1, %s376
        $region24: #{decoder_forward.1} parent=15 // pred_fallthru
          _
        // Predicated region
        $region25: #{decoder_forward.1} parent=15 // pred_check
          %p378 = pneg %p104
        $region26: #{decoder_forward.1} parent=15 // pred_check_branch
          %380 = sbr.rel (%p378) target = $region28
        $region27: #{decoder_forward.1} parent=15 // pred_region
          %p381 = scmp.lt.s32.totalorder %s28, 1
          %s382 = scalar_select %p381, %s28, 1
          %s383 = smul.addr %s382, 8
          %s384 = scalar_lea.vmem %s2, %s383
        $region28: #{decoder_forward.1} parent=15 // pred_fallthru
          _
        // Predicated region
        $region29: #{decoder_forward.1} parent=15 // pred_check
          %p385 = pneg %p130
        $region30: #{decoder_forward.1} parent=15 // pred_check_branch
          %387 = sbr.rel (%p385) target = $region32
        $region31: #{decoder_forward.1} parent=15 // pred_region
          %p388 = scmp.lt.s32.totalorder %s28, 1
          %s389 = scalar_select %p388, %s28, 1
          %s390 = smul.addr %s389, 24
          %s391 = smul.addr %s390, 8
          %s392 = scalar_lea.vmem %s3, %s391
        $region32: #{decoder_forward.1} parent=15 // pred_fallthru
          _
        // Predicated region
        $region33: #{decoder_forward.1} parent=15 // pred_check
          %p393 = pneg %p156
        $region34: #{decoder_forward.1} parent=15 // pred_check_branch
          %395 = sbr.rel (%p393) target = $region36
        $region35: #{decoder_forward.1} parent=15 // pred_region
          %p396 = scmp.lt.s32.totalorder %s28, 1
          %s397 = scalar_select %p396, %s28, 1
          %s398 = smul.addr %s397, 4
          %s399 = smul.addr %s398, 8
          %s400 = scalar_lea.vmem %s4, %s399
        $region36: #{decoder_forward.1} parent=15 // pred_fallthru
          _
        // Predicated region
        $region37: #{decoder_forward.1} parent=15 // pred_check
          %p401 = pneg %p182
        $region38: #{decoder_forward.1} parent=15 // pred_check_branch
          %403 = sbr.rel (%p401) target = $region40
        $region39: #{decoder_forward.1} parent=15 // pred_region
          %p404 = scmp.lt.s32.totalorder %s28, 1
          %s405 = scalar_select %p404, %s28, 1
          %s406 = smul.addr %s405, 24
          %s407 = smul.addr %s406, 8
          %s408 = scalar_lea.vmem %s5, %s407
        $region40: #{decoder_forward.1} parent=15 // pred_fallthru
          _
        // Predicated region
        $region41: #{decoder_forward.1} parent=15 // pred_check
          %p409 = pneg %p208
        $region42: #{decoder_forward.1} parent=15 // pred_check_branch
          %411 = sbr.rel (%p409) target = $region44
        $region43: #{decoder_forward.1} parent=15 // pred_region
          %p412 = scmp.lt.s32.totalorder %s28, 1
          %s413 = scalar_select %p412, %s28, 1
          %s414 = smul.addr %s413, 4
          %s415 = smul.addr %s414, 8
          %s416 = scalar_lea.vmem %s6, %s415
        $region44: #{decoder_forward.1} parent=15 // pred_fallthru
          _
        // Predicated region
        $region45: #{decoder_forward.1} parent=15 // pred_check
          %p417 = pneg %p234
        $region46: #{decoder_forward.1} parent=15 // pred_check_branch
          %419 = sbr.rel (%p417) target = $region48
        $region47: #{decoder_forward.1} parent=15 // pred_region
          %p420 = scmp.lt.s32.totalorder %s28, 1
          %s421 = scalar_select %p420, %s28, 1
          %s422 = smul.addr %s421, 4
          %s423 = smul.addr %s422, 8
          %s424 = scalar_lea.vmem %s7, %s423
        $region48: #{decoder_forward.1} parent=15 // pred_fallthru
          _
        // Predicated region
        $region49: #{decoder_forward.1} parent=15 // pred_check
          %p425 = pneg %p260
        $region50: #{decoder_forward.1} parent=15 // pred_check_branch
          %427 = sbr.rel (%p425) target = $region52
        $region51: #{decoder_forward.1} parent=15 // pred_region
          %p428 = scmp.lt.s32.totalorder %s28, 1
          %s429 = scalar_select %p428, %s28, 1
          %s430 = scalar_lea.vmem %s8, %s429
        $region52: #{decoder_forward.1} parent=15 // pred_fallthru
          _
        // Predicated region
        $region53: #{decoder_forward.1} parent=15 // pred_check
          %p431 = pneg %p286
        $region54: #{decoder_forward.1} parent=15 // pred_check_branch
          %433 = sbr.rel (%p431) target = $region56
        $region55: #{decoder_forward.1} parent=15 // pred_region
          %p434 = scmp.lt.s32.totalorder %s28, 1
          %s435 = scalar_select %p434, %s28, 1
          %s436 = smul.addr %s435, 16
          %s437 = smul.addr %s436, 8
          %s438 = scalar_lea.vmem %s9, %s437
        $region56: #{decoder_forward.1} parent=15 // pred_fallthru
          _
        // Predicated region
        $region57: #{decoder_forward.1} parent=15 // pred_check
          %p439 = pneg %p312
        $region58: #{decoder_forward.1} parent=15 // pred_check_branch
          %441 = sbr.rel (%p439) target = $region60
        $region59: #{decoder_forward.1} parent=15 // pred_region
          %p442 = scmp.lt.s32.totalorder %s28, 1
          %s443 = scalar_select %p442, %s28, 1
          %s444 = smul.addr %s443, 4
          %s445 = scalar_lea.vmem %s10, %s444
        $region60: #{decoder_forward.1} parent=15 // pred_fallthru
          _
      $region16: #{decoder_forward.1} parent=5 // pred_fallthru
        _
      %p446 = scmp.le.s32.totalorder 1, %s20
      %p447 = scmp.lt.s32.totalorder %s20, 5
      %p448 = pnand %p446, %p447
      %p449 = pneg %p448
      // Predicated region
      $region61: #{decoder_forward.1} parent=5 // pred_check
        _
      $region62: #{decoder_forward.1} parent=5 // pred_check_branch
        %451 = sbr.rel (%p448) target = $region64
      $region63: #{decoder_forward.1} parent=5 // pred_region
        %s452 = ssub.s32 %s20, 1
        %p453 = scmp.lt.s32.totalorder %s29, 1
        %s454 = scalar_select %p453, %s29, 1
        %s455 = smul.addr %s454, 8
        %s456 = scalar_lea.vmem %s0, %s455
        %p457 = pneg %p58
        %p458 = pneg %p55
        %p459 = scmp.lt.s32.totalorder %s29, 1
        %s460 = scalar_select %p459, %s29, 1
        %s461 = smul.addr %s460, 2
        %s462 = smul.addr %s461, 8
        %s463 = scalar_lea.vmem %s1, %s462
        %p464 = pneg %p84
        %p465 = pneg %p81
        %p466 = scmp.lt.s32.totalorder %s30, 1
        %s467 = scalar_select %p466, %s30, 1
        %s468 = smul.addr %s467, 8
        %s469 = scalar_lea.vmem %s2, %s468
        %p470 = pneg %p110
        %p471 = pneg %p107
        %p472 = scmp.lt.s32.totalorder %s30, 1
        %s473 = scalar_select %p472, %s30, 1
        %s474 = smul.addr %s473, 24
        %s475 = smul.addr %s474, 8
        %s476 = scalar_lea.vmem %s3, %s475
        %p477 = pneg %p136
        %p478 = pneg %p133
        %p479 = scmp.lt.s32.totalorder %s30, 1
        %s480 = scalar_select %p479, %s30, 1
        %s481 = smul.addr %s480, 4
        %s482 = smul.addr %s481, 8
        %s483 = scalar_lea.vmem %s4, %s482
        %p484 = pneg %p162
        %p485 = pneg %p159
        %p486 = scmp.lt.s32.totalorder %s30, 1
        %s487 = scalar_select %p486, %s30, 1
        %s488 = smul.addr %s487, 24
        %s489 = smul.addr %s488, 8
        %s490 = scalar_lea.vmem %s5, %s489
        %p491 = pneg %p188
        %p492 = pneg %p185
        %p493 = scmp.lt.s32.totalorder %s30, 1
        %s494 = scalar_select %p493, %s30, 1
        %s495 = smul.addr %s494, 4
        %s496 = smul.addr %s495, 8
        %s497 = scalar_lea.vmem %s6, %s496
        %p498 = pneg %p214
        %p499 = pneg %p211
        %p500 = scmp.lt.s32.totalorder %s30, 1
        %s501 = scalar_select %p500, %s30, 1
        %s502 = smul.addr %s501, 4
        %s503 = smul.addr %s502, 8
        %s504 = scalar_lea.vmem %s7, %s503
        %p505 = pneg %p240
        %p506 = pneg %p237
        %p507 = scmp.lt.s32.totalorder %s30, 1
        %s508 = scalar_select %p507, %s30, 1
        %s509 = scalar_lea.vmem %s8, %s508
        %p510 = pneg %p266
        %p511 = pneg %p263
        %p512 = scmp.lt.s32.totalorder %s30, 1
        %s513 = scalar_select %p512, %s30, 1
        %s514 = smul.addr %s513, 16
        %s515 = smul.addr %s514, 8
        %s516 = scalar_lea.vmem %s9, %s515
        %p517 = pneg %p292
        %p518 = pneg %p289
        %p519 = scmp.lt.s32.totalorder %s30, 1
        %s520 = scalar_select %p519, %s30, 1
        %s521 = smul.addr %s520, 4
        %s522 = scalar_lea.vmem %s10, %s521
        %p523 = pneg %p318
        %p524 = pneg %p315
        %p525 = pneg %p344
        %p526 = pneg %p341
        %s527 = sand.u32 %s331, 1
        %s528 = scalar_lea.sflag [#allocation4], %s527
        %s529 = sand.u32 %s331, 1
        %s530 = smul.addr %s529, 8
        %s531 = scalar_lea.vmem [#allocation3], %s530
        %p532 = scmp.lt.s32.totalorder %s29, 1
        %s533 = scalar_select %p532, %s29, 1
        %s534 = smul.addr %s533, 8
        %s535 = scalar_lea.vmem %s0, %s534
        %p536 = scmp.lt.s32.totalorder %s29, 1
        %s537 = scalar_select %p536, %s29, 1
        %s538 = smul.addr %s537, 2
        %s539 = smul.addr %s538, 8
        %s540 = scalar_lea.vmem %s1, %s539
        %p541 = scmp.lt.s32.totalorder %s30, 1
        %s542 = scalar_select %p541, %s30, 1
        %s543 = smul.addr %s542, 8
        %s544 = scalar_lea.vmem %s2, %s543
        %p545 = scmp.lt.s32.totalorder %s30, 1
        %s546 = scalar_select %p545, %s30, 1
        %s547 = smul.addr %s546, 24
        %s548 = smul.addr %s547, 8
        %s549 = scalar_lea.vmem %s3, %s548
        %p550 = scmp.lt.s32.totalorder %s30, 1
        %s551 = scalar_select %p550, %s30, 1
        %s552 = smul.addr %s551, 4
        %s553 = smul.addr %s552, 8
        %s554 = scalar_lea.vmem %s4, %s553
        %p555 = scmp.lt.s32.totalorder %s30, 1
        %s556 = scalar_select %p555, %s30, 1
        %s557 = smul.addr %s556, 24
        %s558 = smul.addr %s557, 8
        %s559 = scalar_lea.vmem %s5, %s558
        %p560 = scmp.lt.s32.totalorder %s30, 1
        %s561 = scalar_select %p560, %s30, 1
        %s562 = smul.addr %s561, 4
        %s563 = smul.addr %s562, 8
        %s564 = scalar_lea.vmem %s6, %s563
        %p565 = scmp.lt.s32.totalorder %s30, 1
        %s566 = scalar_select %p565, %s30, 1
        %s567 = smul.addr %s566, 4
        %s568 = smul.addr %s567, 8
        %s569 = scalar_lea.vmem %s7, %s568
        %p570 = scmp.lt.s32.totalorder %s30, 1
        %s571 = scalar_select %p570, %s30, 1
        %s572 = scalar_lea.vmem %s8, %s571
        %p573 = scmp.lt.s32.totalorder %s30, 1
        %s574 = scalar_select %p573, %s30, 1
        %s575 = smul.addr %s574, 16
        %s576 = smul.addr %s575, 8
        %s577 = scalar_lea.vmem %s9, %s576
        %p578 = scmp.lt.s32.totalorder %s30, 1
        %s579 = scalar_select %p578, %s30, 1
        %s580 = smul.addr %s579, 4
        %s581 = scalar_lea.vmem %s10, %s580
        %p583 = scmp.eq.s32.totalorder %s30, 0
        // Predicated region
        $region65: #{decoder_forward.1} parent=63 // pred_check
          %p584 = pneg %p583
        $region66: #{decoder_forward.1} parent=63 // pred_check_branch
          %586 = sbr.rel (%p584) target = $region68
        $region67: #{decoder_forward.1} parent=63 // pred_region
          %v587 = vld [vmem:[%s535] sm:$0xff]
          %vm588 = vcmask 261120
          %589 = vst.msk [vmem:[#allocation2] sm:$0xff] %vm588, %v587
        $region68: #{decoder_forward.1} parent=63 // pred_fallthru
          _
        %v590 = vld [vmem:[#allocation2] sm:$0xff]
        %v591 = vld [vmem:[%s540] sm:$0xff]
        %v592 = vld [vmem:[%s540 + $0x8] sm:$0xf]
        %v593 = vld [vmem:[%s544] sm:$0x3f]
        %v594 = vld [vmem:[%s581] sm:$0x7]
        %vm595 = vcmask 261120
        %v596 = vsel %vm595, %v590, 0.0
        %597 = vadd.xlane.f32.xlu0 %v596
        %v598 = vpop.xlane.xlu0 %597
        %v599 = vrcp.pop 32.0
        %v600 = vmul.f32 %v598, %v599
        %v601 = vsub.f32 %v590, %v600
        %v602 = vmul.f32 %v601, %v601
        %v603 = vsel %vm595, %v602, 0.0
        %604 = vadd.xlane.f32.xlu0 %v603
        %v605 = vpop.xlane.xlu0 %604
        %v606 = vmul.f32 %v605, %v599
        %v607 = vadd.f32 %v606, 1e-05
        %v608 = vrsqrt.pop %v607
        %v609 = vmul.f32 %v601, %v608
        %v610 = vlaneseq
        %v611 = vshrl.u32 %v610, 7
        %v612 = vsub.s32 0, %v611
        %v613 = vrot.slane %v593, %v612
        %v614 = vmul.f32 %v609, %v613
        %v615 = vlaneseq
        %v616 = vshrl.u32 %v615, 7
        %v617 = vsub.s32 1, %v616
        %v618 = vrot.slane %v593, %v617
        %v619 = vadd.f32 %v614, %v618
        %v620 = vld [vmem:[%s549] sm:$0xff]
        %v621 = vld [vmem:[%s549 + $0x8] sm:$0xff]
        %v622 = vld [vmem:[%s549 + $0x10] sm:$0xff]
        %v623 = vld [vmem:[%s549 + $0x18] sm:$0xff]
        %v624 = vpack.c.bf16 %v619, %v619
        %v625 = vpack.c.bf16 %v621, %v620
        %v626 = vpack.c.bf16 %v623, %v622
        %v628 = vsel %vm595, %v624, 0
        %630 = vmatprep.subr.bf16.mxu0 0
        %631 = vmatpush1.bf16.msra.mxu0 %v625
        %632 = vmatprep.subr.bf16.mxu0 0
        %633 = vmatpush1.bf16.msra.mxu0 %v626
        %634 = vmatprep.subr.bf16.mxu0 0
        %635 = vmatpush1.bf16.msra.mxu0 0
        %636 = vmatprep.subr.bf16.mxu0 0
        %637 = vmatpush1.bf16.msra.mxu0 0
        %638 = vmatprep.subr.bf16.mxu0 0
        %639 = vmatpush1.bf16.msra.mxu0 0
        %640 = vmatprep.subr.bf16.mxu0 0
        %641 = vmatpush1.bf16.msra.mxu0 0
        %642 = vmatprep.subr.bf16.mxu0 0
        %643 = vmatpush1.bf16.msra.mxu0 0
        %644 = vmatprep.subr.bf16.mxu0 0
        %645 = vmatpush1.bf16.msra.mxu0 0
        %646 = vmatprep.subr.bf16.mxu0 0
        %647 = vmatpush1.bf16.msra.mxu0 0
        %648 = vmatprep.subr.bf16.mxu0 0
        %649 = vmatpush1.bf16.msra.mxu0 0
        %650 = vmatprep.subr.bf16.mxu0 0
        %651 = vmatpush1.bf16.msra.mxu0 0
        %652 = vmatprep.subr.bf16.mxu0 0
        %653 = vmatpush1.bf16.msra.mxu0 0
        %654 = vmatprep.subr.bf16.mxu0 0
        %655 = vmatpush1.bf16.msra.mxu0 0
        %656 = vmatprep.subr.bf16.mxu0 0
        %657 = vmatpush1.bf16.msra.mxu0 0
        %658 = vmatprep.subr.bf16.mxu0 0
        %659 = vmatpush1.bf16.msra.mxu0 0
        %660 = vmatprep.subr.bf16.mxu0 0
        %661 = vmatpush1.bf16.msra.mxu0 0
        %662 = vmatprep.mubr.bf16.mxu0 0
        %663 = vmatmul.mubr.bf16.gmra.mrb[0].mxu0 %v628
        %v664 = vpop.f32.mrb[0].mxu0
        %v665 = vadd.f32 0.0, %v664
        %v666 = vpop.f32.mrb[0].mxu0
        %v667 = vpop.f32.mrb[0].mxu0
        %v668 = vpop.f32.mrb[0].mxu0
        %669 = vdwg.mxu0
        %s670 = scalar_lea.vmem %s549, 64
        %v671 = vld [vmem:[%s670] sm:$0xff]
        %v672 = vld [vmem:[%s670 + $0x8] sm:$0xff]
        %v673 = vld [vmem:[%s670 + $0x10] sm:$0xff]
        %v674 = vld [vmem:[%s670 + $0x18] sm:$0xff]
        %v675 = vpack.c.bf16 %v672, %v671
        %v676 = vpack.c.bf16 %v674, %v673
        %677 = vmatprep.subr.bf16.mxu0 0
        %678 = vmatpush1.bf16.msra.mxu0 %v675
        %679 = vmatprep.subr.bf16.mxu0 0
        %680 = vmatpush1.bf16.msra.mxu0 %v676
        %681 = vmatprep.subr.bf16.mxu0 0
        %682 = vmatpush1.bf16.msra.mxu0 0
        %683 = vmatprep.subr.bf16.mxu0 0
        %684 = vmatpush1.bf16.msra.mxu0 0
        %685 = vmatprep.subr.bf16.mxu0 0
        %686 = vmatpush1.bf16.msra.mxu0 0
        %687 = vmatprep.subr.bf16.mxu0 0
        %688 = vmatpush1.bf16.msra.mxu0 0
        %689 = vmatprep.subr.bf16.mxu0 0
        %690 = vmatpush1.bf16.msra.mxu0 0
        %691 = vmatprep.subr.bf16.mxu0 0
        %692 = vmatpush1.bf16.msra.mxu0 0
        %693 = vmatprep.subr.bf16.mxu0 0
        %694 = vmatpush1.bf16.msra.mxu0 0
        %695 = vmatprep.subr.bf16.mxu0 0
        %696 = vmatpush1.bf16.msra.mxu0 0
        %697 = vmatprep.subr.bf16.mxu0 0
        %698 = vmatpush1.bf16.msra.mxu0 0
        %699 = vmatprep.subr.bf16.mxu0 0
        %700 = vmatpush1.bf16.msra.mxu0 0
        %701 = vmatprep.subr.bf16.mxu0 0
        %702 = vmatpush1.bf16.msra.mxu0 0
        %703 = vmatprep.subr.bf16.mxu0 0
        %704 = vmatpush1.bf16.msra.mxu0 0
        %705 = vmatprep.subr.bf16.mxu0 0
        %706 = vmatpush1.bf16.msra.mxu0 0
        %707 = vmatprep.subr.bf16.mxu0 0
        %708 = vmatpush1.bf16.msra.mxu0 0
        %709 = vmatprep.mubr.bf16.mxu0 0
        %710 = vmatmul.mubr.bf16.gmra.mrb[0].mxu0 %v628
        %v711 = vpop.f32.mrb[0].mxu0
        %v712 = vadd.f32 0.0, %v711
        %v713 = vpop.f32.mrb[0].mxu0
        %v714 = vpop.f32.mrb[0].mxu0
        %v715 = vpop.f32.mrb[0].mxu0
        %716 = vdwg.mxu0
        %s717 = scalar_lea.vmem %s549, 128
        %v718 = vld [vmem:[%s717] sm:$0xff]
        %v719 = vld [vmem:[%s717 + $0x8] sm:$0xff]
        %v720 = vld [vmem:[%s717 + $0x10] sm:$0xff]
        %v721 = vld [vmem:[%s717 + $0x18] sm:$0xff]
        %v722 = vpack.c.bf16 %v719, %v718
        %v723 = vpack.c.bf16 %v721, %v720
        %724 = vmatprep.subr.bf16.mxu0 0
        %725 = vmatpush1.bf16.msra.mxu0 %v722
        %726 = vmatprep.subr.bf16.mxu0 0
        %727 = vmatpush1.bf16.msra.mxu0 %v723
        %728 = vmatprep.subr.bf16.mxu0 0
        %729 = vmatpush1.bf16.msra.mxu0 0
        %730 = vmatprep.subr.bf16.mxu0 0
        %731 = vmatpush1.bf16.msra.mxu0 0
        %732 = vmatprep.subr.bf16.mxu0 0
        %733 = vmatpush1.bf16.msra.mxu0 0
        %734 = vmatprep.subr.bf16.mxu0 0
        %735 = vmatpush1.bf16.msra.mxu0 0
        %736 = vmatprep.subr.bf16.mxu0 0
        %737 = vmatpush1.bf16.msra.mxu0 0
        %738 = vmatprep.subr.bf16.mxu0 0
        %739 = vmatpush1.bf16.msra.mxu0 0
        %740 = vmatprep.subr.bf16.mxu0 0
        %741 = vmatpush1.bf16.msra.mxu0 0
        %742 = vmatprep.subr.bf16.mxu0 0
        %743 = vmatpush1.bf16.msra.mxu0 0
        %744 = vmatprep.subr.bf16.mxu0 0
        %745 = vmatpush1.bf16.msra.mxu0 0
        %746 = vmatprep.subr.bf16.mxu0 0
        %747 = vmatpush1.bf16.msra.mxu0 0
        %748 = vmatprep.subr.bf16.mxu0 0
        %749 = vmatpush1.bf16.msra.mxu0 0
        %750 = vmatprep.subr.bf16.mxu0 0
        %751 = vmatpush1.bf16.msra.mxu0 0
        %752 = vmatprep.subr.bf16.mxu0 0
        %753 = vmatpush1.bf16.msra.mxu0 0
        %754 = vmatprep.subr.bf16.mxu0 0
        %755 = vmatpush1.bf16.msra.mxu0 0
        %756 = vmatprep.mubr.bf16.mxu0 0
        %757 = vmatmul.mubr.bf16.gmra.mrb[0].mxu0 %v628
        %v758 = vpop.f32.mrb[0].mxu0
        %v759 = vadd.f32 0.0, %v758
        %v760 = vpop.f32.mrb[0].mxu0
        %v761 = vpop.f32.mrb[0].mxu0
        %v762 = vpop.f32.mrb[0].mxu0
        %763 = vdwg.mxu0
        %v764 = vpack.c.bf16 %v665, %v665
        %v765 = vpack.c.bf16 %v712, %v712
        %vm766 = vcmask 130048
        %v768 = vsel %vm766, %v764, 0
        %v771 = vsel %vm766, %v765, 0
        %773 = vmatprep.subr.bf16.mxu0 0
        %774 = vmatpush1.bf16.xpose.msra.mxu0 %v771
        %775 = vmatprep.subr.bf16.mxu0 0
        %776 = vmatpush1.bf16.xpose.msra.mxu0 0
        %777 = vmatprep.subr.bf16.mxu0 0
        %778 = vmatpush1.bf16.xpose.msra.mxu0 0
        %779 = vmatprep.subr.bf16.mxu0 0
        %780 = vmatpush1.bf16.xpose.msra.mxu0 0
        %781 = vmatprep.subr.bf16.mxu0 0
        %782 = vmatpush1.bf16.xpose.msra.mxu0 0
        %783 = vmatprep.subr.bf16.mxu0 0
        %784 = vmatpush1.bf16.xpose.msra.mxu0 0
        %785 = vmatprep.subr.bf16.mxu0 0
        %786 = vmatpush1.bf16.xpose.msra.mxu0 0
        %787 = vmatprep.subr.bf16.mxu0 0
        %788 = vmatpush1.bf16.xpose.msra.mxu0 0
        %789 = vmatprep.subr.bf16.mxu0 0
        %790 = vmatpush1.bf16.xpose.msra.mxu0 0
        %791 = vmatprep.subr.bf16.mxu0 0
        %792 = vmatpush1.bf16.xpose.msra.mxu0 0
        %793 = vmatprep.subr.bf16.mxu0 0
        %794 = vmatpush1.bf16.xpose.msra.mxu0 0
        %795 = vmatprep.subr.bf16.mxu0 0
        %796 = vmatpush1.bf16.xpose.msra.mxu0 0
        %797 = vmatprep.subr.bf16.mxu0 0
        %798 = vmatpush1.bf16.xpose.msra.mxu0 0
        %799 = vmatprep.subr.bf16.mxu0 0
        %800 = vmatpush1.bf16.xpose.msra.mxu0 0
        %801 = vmatprep.subr.bf16.mxu0 0
        %802 = vmatpush1.bf16.xpose.msra.mxu0 0
        %803 = vmatprep.subr.bf16.mxu0 0
        %804 = vmatpush1.bf16.xpose.msra.mxu0 0
        %805 = vmatprep.mubr.bf16.mxu0 0
        %806 = vmatmul.mubr.bf16.gmra.mrb[0].mxu0 %v768
        %v807 = vpop.f32.mrb[0].mxu0
        %v808 = vadd.f32 0.0, %v807
        %v809 = vpop.f32.mrb[0].mxu0
        %v810 = vpop.f32.mrb[0].mxu0
        %v811 = vpop.f32.mrb[0].mxu0
        %812 = vdwg.mxu0
        %v813 = vmul.f32 %v808, 0.25
        %vm814 = vcmask 64512
        %v815 = vsel %vm814, %v813, -inf
        %816 = vmax.xlane.f32.xlu0 %v815
        %v817 = vpop.xlane.xlu0 %816
        %v818 = vsub.f32 %v813, %v817
        %v819 = vmul.f32 %v818, 1.442695
        %v820 = vpow.pop %v819
        %v821 = vsel %vm814, %v820, 0.0
        %822 = vadd.xlane.f32.xlu0 %v821
        %v823 = vpop.xlane.xlu0 %822
        %v824 = vrcp.pop %v823
        %v825 = vmul.f32 %v820, %v824
        %v826 = vpack.c.bf16 %v825, %v825
        %v827 = vpack.c.bf16 %v759, %v759
        %v829 = vsel %vm814, %v826, 0
        %vm831 = vcmask 1043456
        %v833 = vsel %vm831, %v827, 0
        %835 = vmatprep.subr.bf16.mxu0 0
        %836 = vmatpush1.bf16.msra.mxu0 %v833
        %837 = vmatprep.subr.bf16.mxu0 0
        %838 = vmatpush1.bf16.msra.mxu0 0
        %839 = vmatprep.subr.bf16.mxu0 0
        %840 = vmatpush1.bf16.msra.mxu0 0
        %841 = vmatprep.subr.bf16.mxu0 0
        %842 = vmatpush1.bf16.msra.mxu0 0
        %843 = vmatprep.subr.bf16.mxu0 0
        %844 = vmatpush1.bf16.msra.mxu0 0
        %845 = vmatprep.subr.bf16.mxu0 0
        %846 = vmatpush1.bf16.msra.mxu0 0
        %847 = vmatprep.subr.bf16.mxu0 0
        %848 = vmatpush1.bf16.msra.mxu0 0
        %849 = vmatprep.subr.bf16.mxu0 0
        %850 = vmatpush1.bf16.msra.mxu0 0
        %851 = vmatprep.subr.bf16.mxu0 0
        %852 = vmatpush1.bf16.msra.mxu0 0
        %853 = vmatprep.subr.bf16.mxu0 0
        %854 = vmatpush1.bf16.msra.mxu0 0
        %855 = vmatprep.subr.bf16.mxu0 0
        %856 = vmatpush1.bf16.msra.mxu0 0
        %857 = vmatprep.subr.bf16.mxu0 0
        %858 = vmatpush1.bf16.msra.mxu0 0
        %859 = vmatprep.subr.bf16.mxu0 0
        %860 = vmatpush1.bf16.msra.mxu0 0
        %861 = vmatprep.subr.bf16.mxu0 0
        %862 = vmatpush1.bf16.msra.mxu0 0
        %863 = vmatprep.subr.bf16.mxu0 0
        %864 = vmatpush1.bf16.msra.mxu0 0
        %865 = vmatprep.subr.bf16.mxu0 0
        %866 = vmatpush1.bf16.msra.mxu0 0
        %867 = vmatprep.mubr.bf16.mxu0 0
        %868 = vmatmul.mubr.bf16.gmra.mrb[0].mxu0 %v829
        %v869 = vpop.f32.mrb[0].mxu0
        %v870 = vadd.f32 0.0, %v869
        %v871 = vpop.f32.mrb[0].mxu0
        %v872 = vpop.f32.mrb[0].mxu0
        %v873 = vpop.f32.mrb[0].mxu0
        %874 = vdwg.mxu0
        %v875 = vld [vmem:[%s554] sm:$0xff]
        %v876 = vld [vmem:[%s554 + $0x8] sm:$0xff]
        %v877 = vpack.c.bf16 %v870, %v870
        %v878 = vpack.c.bf16 %v876, %v875
        %s879 = scalar_lea.vmem %s549, 32
        %v880 = vld [vmem:[%s879] sm:$0xff]
        %v881 = vld [vmem:[%s879 + $0x8] sm:$0xff]
        %v882 = vld [vmem:[%s879 + $0x10] sm:$0xff]
        %v883 = vld [vmem:[%s879 + $0x18] sm:$0xff]
        %v884 = vpack.c.bf16 %v881, %v880
        %v885 = vpack.c.bf16 %v883, %v882
        %886 = vmatprep.subr.bf16.mxu0 0
        %887 = vmatpush1.bf16.msra.mxu0 %v884
        %888 = vmatprep.subr.bf16.mxu0 0
        %889 = vmatpush1.bf16.msra.mxu0 %v885
        %890 = vmatprep.subr.bf16.mxu0 0
        %891 = vmatpush1.bf16.msra.mxu0 0
        %892 = vmatprep.subr.bf16.mxu0 0
        %893 = vmatpush1.bf16.msra.mxu0 0
        %894 = vmatprep.subr.bf16.mxu0 0
        %895 = vmatpush1.bf16.msra.mxu0 0
        %896 = vmatprep.subr.bf16.mxu0 0
        %897 = vmatpush1.bf16.msra.mxu0 0
        %898 = vmatprep.subr.bf16.mxu0 0
        %899 = vmatpush1.bf16.msra.mxu0 0
        %900 = vmatprep.subr.bf16.mxu0 0
        %901 = vmatpush1.bf16.msra.mxu0 0
        %902 = vmatprep.subr.bf16.mxu0 0
        %903 = vmatpush1.bf16.msra.mxu0 0
        %904 = vmatprep.subr.bf16.mxu0 0
        %905 = vmatpush1.bf16.msra.mxu0 0
        %906 = vmatprep.subr.bf16.mxu0 0
        %907 = vmatpush1.bf16.msra.mxu0 0
        %908 = vmatprep.subr.bf16.mxu0 0
        %909 = vmatpush1.bf16.msra.mxu0 0
        %910 = vmatprep.subr.bf16.mxu0 0
        %911 = vmatpush1.bf16.msra.mxu0 0
        %912 = vmatprep.subr.bf16.mxu0 0
        %913 = vmatpush1.bf16.msra.mxu0 0
        %914 = vmatprep.subr.bf16.mxu0 0
        %915 = vmatpush1.bf16.msra.mxu0 0
        %916 = vmatprep.subr.bf16.mxu0 0
        %917 = vmatpush1.bf16.msra.mxu0 0
        %918 = vmatprep.mubr.bf16.mxu0 0
        %919 = vmatmul.mubr.bf16.gmra.mrb[0].mxu0 %v628
        %v920 = vpop.f32.mrb[0].mxu0
        %v921 = vadd.f32 0.0, %v920
        %v922 = vpop.f32.mrb[0].mxu0
        %v923 = vpop.f32.mrb[0].mxu0
        %v924 = vpop.f32.mrb[0].mxu0
        %925 = vdwg.mxu0
        %s926 = scalar_lea.vmem %s549, 96
        %v927 = vld [vmem:[%s926] sm:$0xff]
        %v928 = vld [vmem:[%s926 + $0x8] sm:$0xff]
        %v929 = vld [vmem:[%s926 + $0x10] sm:$0xff]
        %v930 = vld [vmem:[%s926 + $0x18] sm:$0xff]
        %v931 = vpack.c.bf16 %v928, %v927
        %v932 = vpack.c.bf16 %v930, %v929
        %933 = vmatprep.subr.bf16.mxu0 0
        %934 = vmatpush1.bf16.msra.mxu0 %v931
        %935 = vmatprep.subr.bf16.mxu0 0
        %936 = vmatpush1.bf16.msra.mxu0 %v932
        %937 = vmatprep.subr.bf16.mxu0 0
        %938 = vmatpush1.bf16.msra.mxu0 0
        %939 = vmatprep.subr.bf16.mxu0 0
        %940 = vmatpush1.bf16.msra.mxu0 0
        %941 = vmatprep.subr.bf16.mxu0 0
        %942 = vmatpush1.bf16.msra.mxu0 0
        %943 = vmatprep.subr.bf16.mxu0 0
        %944 = vmatpush1.bf16.msra.mxu0 0
        %945 = vmatprep.subr.bf16.mxu0 0
        %946 = vmatpush1.bf16.msra.mxu0 0
        %947 = vmatprep.subr.bf16.mxu0 0
        %948 = vmatpush1.bf16.msra.mxu0 0
        %949 = vmatprep.subr.bf16.mxu0 0
        %950 = vmatpush1.bf16.msra.mxu0 0
        %951 = vmatprep.subr.bf16.mxu0 0
        %952 = vmatpush1.bf16.msra.mxu0 0
        %953 = vmatprep.subr.bf16.mxu0 0
        %954 = vmatpush1.bf16.msra.mxu0 0
        %955 = vmatprep.subr.bf16.mxu0 0
        %956 = vmatpush1.bf16.msra.mxu0 0
        %957 = vmatprep.subr.bf16.mxu0 0
        %958 = vmatpush1.bf16.msra.mxu0 0
        %959 = vmatprep.subr.bf16.mxu0 0
        %960 = vmatpush1.bf16.msra.mxu0 0
        %961 = vmatprep.subr.bf16.mxu0 0
        %962 = vmatpush1.bf16.msra.mxu0 0
        %963 = vmatprep.subr.bf16.mxu0 0
        %964 = vmatpush1.bf16.msra.mxu0 0
        %965 = vmatprep.mubr.bf16.mxu0 0
        %966 = vmatmul.mubr.bf16.gmra.mrb[0].mxu0 %v628
        %v967 = vpop.f32.mrb[0].mxu0
        %v968 = vadd.f32 0.0, %v967
        %v969 = vpop.f32.mrb[0].mxu0
        %v970 = vpop.f32.mrb[0].mxu0
        %v971 = vpop.f32.mrb[0].mxu0
        %972 = vdwg.mxu0
        %s973 = scalar_lea.vmem %s549, 160
        %v974 = vld [vmem:[%s973] sm:$0xff]
        %v975 = vld [vmem:[%s973 + $0x8] sm:$0xff]
        %v976 = vld [vmem:[%s973 + $0x10] sm:$0xff]
        %v977 = vld [vmem:[%s973 + $0x18] sm:$0xff]
        %v978 = vpack.c.bf16 %v975, %v974
        %v979 = vpack.c.bf16 %v977, %v976
        %980 = vmatprep.subr.bf16.mxu0 0
        %981 = vmatpush1.bf16.msra.mxu0 %v978
        %982 = vmatprep.subr.bf16.mxu0 0
        %983 = vmatpush1.bf16.msra.mxu0 %v979
        %984 = vmatprep.subr.bf16.mxu0 0
        %985 = vmatpush1.bf16.msra.mxu0 0
        %986 = vmatprep.subr.bf16.mxu0 0
        %987 = vmatpush1.bf16.msra.mxu0 0
        %988 = vmatprep.subr.bf16.mxu0 0
        %989 = vmatpush1.bf16.msra.mxu0 0
        %990 = vmatprep.subr.bf16.mxu0 0
        %991 = vmatpush1.bf16.msra.mxu0 0
        %992 = vmatprep.subr.bf16.mxu0 0
        %993 = vmatpush1.bf16.msra.mxu0 0
        %994 = vmatprep.subr.bf16.mxu0 0
        %995 = vmatpush1.bf16.msra.mxu0 0
        %996 = vmatprep.subr.bf16.mxu0 0
        %997 = vmatpush1.bf16.msra.mxu0 0
        %998 = vmatprep.subr.bf16.mxu0 0
        %999 = vmatpush1.bf16.msra.mxu0 0
        %1000 = vmatprep.subr.bf16.mxu0 0
        %1001 = vmatpush1.bf16.msra.mxu0 0
        %1002 = vmatprep.subr.bf16.mxu0 0
        %1003 = vmatpush1.bf16.msra.mxu0 0
        %1004 = vmatprep.subr.bf16.mxu0 0
        %1005 = vmatpush1.bf16.msra.mxu0 0
        %1006 = vmatprep.subr.bf16.mxu0 0
        %1007 = vmatpush1.bf16.msra.mxu0 0
        %1008 = vmatprep.subr.bf16.mxu0 0
        %1009 = vmatpush1.bf16.msra.mxu0 0
        %1010 = vmatprep.subr.bf16.mxu0 0
        %1011 = vmatpush1.bf16.msra.mxu0 0
        %1012 = vmatprep.mubr.bf16.mxu0 0
        %1013 = vmatmul.mubr.bf16.gmra.mrb[0].mxu0 %v628
        %v1014 = vpop.f32.mrb[0].mxu0
        %v1015 = vadd.f32 0.0, %v1014
        %v1016 = vpop.f32.mrb[0].mxu0
        %v1017 = vpop.f32.mrb[0].mxu0
        %v1018 = vpop.f32.mrb[0].mxu0
        %1019 = vdwg.mxu0
        %v1020 = vpack.c.bf16 %v921, %v921
        %v1021 = vpack.c.bf16 %v968, %v968
        %v1023 = vsel %vm766, %v1020, 0
        %v1026 = vsel %vm766, %v1021, 0
        %1028 = vmatprep.subr.bf16.mxu0 0
        %1029 = vmatpush1.bf16.xpose.msra.mxu0 %v1026
        %1030 = vmatprep.subr.bf16.mxu0 0
        %1031 = vmatpush1.bf16.xpose.msra.mxu0 0
        %1032 = vmatprep.subr.bf16.mxu0 0
        %1033 = vmatpush1.bf16.xpose.msra.mxu0 0
        %1034 = vmatprep.subr.bf16.mxu0 0
        %1035 = vmatpush1.bf16.xpose.msra.mxu0 0
        %1036 = vmatprep.subr.bf16.mxu0 0
        %1037 = vmatpush1.bf16.xpose.msra.mxu0 0
        %1038 = vmatprep.subr.bf16.mxu0 0
        %1039 = vmatpush1.bf16.xpose.msra.mxu0 0
        %1040 = vmatprep.subr.bf16.mxu0 0
        %1041 = vmatpush1.bf16.xpose.msra.mxu0 0
        %1042 = vmatprep.subr.bf16.mxu0 0
        %1043 = vmatpush1.bf16.xpose.msra.mxu0 0
        %1044 = vmatprep.subr.bf16.mxu0 0
        %1045 = vmatpush1.bf16.xpose.msra.mxu0 0
        %1046 = vmatprep.subr.bf16.mxu0 0
        %1047 = vmatpush1.bf16.xpose.msra.mxu0 0
        %1048 = vmatprep.subr.bf16.mxu0 0
        %1049 = vmatpush1.bf16.xpose.msra.mxu0 0
        %1050 = vmatprep.subr.bf16.mxu0 0
        %1051 = vmatpush1.bf16.xpose.msra.mxu0 0
        %1052 = vmatprep.subr.bf16.mxu0 0
        %1053 = vmatpush1.bf16.xpose.msra.mxu0 0
        %1054 = vmatprep.subr.bf16.mxu0 0
        %1055 = vmatpush1.bf16.xpose.msra.mxu0 0
        %1056 = vmatprep.subr.bf16.mxu0 0
        %1057 = vmatpush1.bf16.xpose.msra.mxu0 0
        %1058 = vmatprep.subr.bf16.mxu0 0
        %1059 = vmatpush1.bf16.xpose.msra.mxu0 0
        %1060 = vmatprep.mubr.bf16.mxu0 0
        %1061 = vmatmul.mubr.bf16.gmra.mrb[0].mxu0 %v1023
        %v1062 = vpop.f32.mrb[0].mxu0
        %v1063 = vadd.f32 0.0, %v1062
        %v1064 = vpop.f32.mrb[0].mxu0
        %v1065 = vpop.f32.mrb[0].mxu0
        %v1066 = vpop.f32.mrb[0].mxu0
        %1067 = vdwg.mxu0
        %v1068 = vmul.f32 %v1063, 0.25
        %v1069 = vsel %vm814, %v1068, -inf
        %1070 = vmax.xlane.f32.xlu0 %v1069
        %v1071 = vpop.xlane.xlu0 %1070
        %v1072 = vsub.f32 %v1068, %v1071
        %v1073 = vmul.f32 %v1072, 1.442695
        %v1074 = vpow.pop %v1073
        %v1075 = vsel %vm814, %v1074, 0.0
        %1076 = vadd.xlane.f32.xlu0 %v1075
        %v1077 = vpop.xlane.xlu0 %1076
        %v1078 = vrcp.pop %v1077
        %v1079 = vmul.f32 %v1074, %v1078
        %v1080 = vpack.c.bf16 %v1079, %v1079
        %v1081 = vpack.c.bf16 %v1015, %v1015
        %v1083 = vsel %vm814, %v1080, 0
        %v1086 = vsel %vm831, %v1081, 0
        %1088 = vmatprep.subr.bf16.mxu0 0
        %1089 = vmatpush1.bf16.msra.mxu0 %v1086
        %1090 = vmatprep.subr.bf16.mxu0 0
        %1091 = vmatpush1.bf16.msra.mxu0 0
        %1092 = vmatprep.subr.bf16.mxu0 0
        %1093 = vmatpush1.bf16.msra.mxu0 0
        %1094 = vmatprep.subr.bf16.mxu0 0
        %1095 = vmatpush1.bf16.msra.mxu0 0
        %1096 = vmatprep.subr.bf16.mxu0 0
        %1097 = vmatpush1.bf16.msra.mxu0 0
        %1098 = vmatprep.subr.bf16.mxu0 0
        %1099 = vmatpush1.bf16.msra.mxu0 0
        %1100 = vmatprep.subr.bf16.mxu0 0
        %1101 = vmatpush1.bf16.msra.mxu0 0
        %1102 = vmatprep.subr.bf16.mxu0 0
        %1103 = vmatpush1.bf16.msra.mxu0 0
        %1104 = vmatprep.subr.bf16.mxu0 0
        %1105 = vmatpush1.bf16.msra.mxu0 0
        %1106 = vmatprep.subr.bf16.mxu0 0
        %1107 = vmatpush1.bf16.msra.mxu0 0
        %1108 = vmatprep.subr.bf16.mxu0 0
        %1109 = vmatpush1.bf16.msra.mxu0 0
        %1110 = vmatprep.subr.bf16.mxu0 0
        %1111 = vmatpush1.bf16.msra.mxu0 0
        %1112 = vmatprep.subr.bf16.mxu0 0
        %1113 = vmatpush1.bf16.msra.mxu0 0
        %1114 = vmatprep.subr.bf16.mxu0 0
        %1115 = vmatpush1.bf16.msra.mxu0 0
        %1116 = vmatprep.subr.bf16.mxu0 0
        %1117 = vmatpush1.bf16.msra.mxu0 0
        %1118 = vmatprep.subr.bf16.mxu0 0
        %1119 = vmatpush1.bf16.msra.mxu0 0
        %1120 = vmatprep.mubr.bf16.mxu0 0
        %1121 = vmatmul.mubr.bf16.gmra.mrb[0].mxu0 %v1083
        %v1122 = vpop.f32.mrb[0].mxu0
        %v1123 = vadd.f32 0.0, %v1122
        %v1124 = vpop.f32.mrb[0].mxu0
        %v1125 = vpop.f32.mrb[0].mxu0
        %v1126 = vpop.f32.mrb[0].mxu0
        %1127 = vdwg.mxu0
        %s1128 = scalar_lea.vmem %s554, 16
        %v1129 = vld [vmem:[%s1128] sm:$0xff]
        %v1130 = vld [vmem:[%s1128 + $0x8] sm:$0xff]
        %v1131 = vpack.c.bf16 %v1123, %v1123
        %v1132 = vpack.c.bf16 %v1130, %v1129
        %v1134 = vsel %vm766, %v1131, 0
        %1136 = vmatprep.subr.bf16.mxu0 0
        %1137 = vmatpush1.bf16.msra.mxu0 %v1132
        %1138 = vmatprep.subr.bf16.mxu0 0
        %1139 = vmatpush1.bf16.msra.mxu0 0
        %1140 = vmatprep.subr.bf16.mxu0 0
        %1141 = vmatpush1.bf16.msra.mxu0 0
        %1142 = vmatprep.subr.bf16.mxu0 0
        %1143 = vmatpush1.bf16.msra.mxu0 0
        %1144 = vmatprep.subr.bf16.mxu0 0
        %1145 = vmatpush1.bf16.msra.mxu0 0
        %1146 = vmatprep.subr.bf16.mxu0 0
        %1147 = vmatpush1.bf16.msra.mxu0 0
        %1148 = vmatprep.subr.bf16.mxu0 0
        %1149 = vmatpush1.bf16.msra.mxu0 0
        %1150 = vmatprep.subr.bf16.mxu0 0
        %1151 = vmatpush1.bf16.msra.mxu0 0
        %1152 = vmatprep.subr.bf16.mxu0 0
        %1153 = vmatpush1.bf16.msra.mxu0 0
        %1154 = vmatprep.subr.bf16.mxu0 0
        %1155 = vmatpush1.bf16.msra.mxu0 0
        %1156 = vmatprep.subr.bf16.mxu0 0
        %1157 = vmatpush1.bf16.msra.mxu0 0
        %1158 = vmatprep.subr.bf16.mxu0 0
        %1159 = vmatpush1.bf16.msra.mxu0 0
        %1160 = vmatprep.subr.bf16.mxu0 0
        %1161 = vmatpush1.bf16.msra.mxu0 0
        %1162 = vmatprep.subr.bf16.mxu0 0
        %1163 = vmatpush1.bf16.msra.mxu0 0
        %1164 = vmatprep.subr.bf16.mxu0 0
        %1165 = vmatpush1.bf16.msra.mxu0 0
        %1166 = vmatprep.subr.bf16.mxu0 0
        %1167 = vmatpush1.bf16.msra.mxu0 0
        %1168 = vmatprep.mubr.bf16.mxu0 0
        %1169 = vmatmul.mubr.bf16.gmra.mrb[0].mxu0 %v1134
        %v1170 = vpop.f32.mrb[0].mxu0
        %v1171 = vadd.f32 0.0, %v1170
        %v1172 = vpop.f32.mrb[0].mxu0
        %v1173 = vpop.f32.mrb[0].mxu0
        %v1174 = vpop.f32.mrb[0].mxu0
        %1175 = vdwg.mxu0
        %v1177 = vsel %vm766, %v877, 0
        %1179 = vmatprep.subr.bf16.mxu0 0
        %1180 = vmatpush1.bf16.msra.mxu0 %v878
        %1181 = vmatprep.subr.bf16.mxu0 0
        %1182 = vmatpush1.bf16.msra.mxu0 0
        %1183 = vmatprep.subr.bf16.mxu0 0
        %1184 = vmatpush1.bf16.msra.mxu0 0
        %1185 = vmatprep.subr.bf16.mxu0 0
        %1186 = vmatpush1.bf16.msra.mxu0 0
        %1187 = vmatprep.subr.bf16.mxu0 0
        %1188 = vmatpush1.bf16.msra.mxu0 0
        %1189 = vmatprep.subr.bf16.mxu0 0
        %1190 = vmatpush1.bf16.msra.mxu0 0
        %1191 = vmatprep.subr.bf16.mxu0 0
        %1192 = vmatpush1.bf16.msra.mxu0 0
        %1193 = vmatprep.subr.bf16.mxu0 0
        %1194 = vmatpush1.bf16.msra.mxu0 0
        %1195 = vmatprep.subr.bf16.mxu0 0
        %1196 = vmatpush1.bf16.msra.mxu0 0
        %1197 = vmatprep.subr.bf16.mxu0 0
        %1198 = vmatpush1.bf16.msra.mxu0 0
        %1199 = vmatprep.subr.bf16.mxu0 0
        %1200 = vmatpush1.bf16.msra.mxu0 0
        %1201 = vmatprep.subr.bf16.mxu0 0
        %1202 = vmatpush1.bf16.msra.mxu0 0
        %1203 = vmatprep.subr.bf16.mxu0 0
        %1204 = vmatpush1.bf16.msra.mxu0 0
        %1205 = vmatprep.subr.bf16.mxu0 0
        %1206 = vmatpush1.bf16.msra.mxu0 0
        %1207 = vmatprep.subr.bf16.mxu0 0
        %1208 = vmatpush1.bf16.msra.mxu0 0
        %1209 = vmatprep.subr.bf16.mxu0 0
        %1210 = vmatpush1.bf16.msra.mxu0 0
        %1211 = vmatprep.mubr.bf16.mxu0 0
        %1212 = vmatmul.mubr.bf16.gmra.mrb[0].mxu0 %v1177
        %v1213 = vpop.f32.mrb[0].mxu0
        %v1214 = vadd.f32 %v1171, %v1213
        %v1215 = vpop.f32.mrb[0].mxu0
        %v1216 = vpop.f32.mrb[0].mxu0
        %v1217 = vpop.f32.mrb[0].mxu0
        %1218 = vdwg.mxu0
        %v1219 = vlaneseq
        %v1220 = vshrl.u32 %v1219, 7
        %v1221 = vsub.s32 0, %v1220
        %v1222 = vrot.slane %v594, %v1221
        %v1223 = vadd.f32 %v1214, %v1222
        %v1224 = vadd.f32 %v590, %v1223
        %1225 = vst.msk [vmem:[#allocation2] sm:$0xff] %vm595, %v1224
        %v1226 = vsel %vm595, %v1224, 0.0
        %1227 = vadd.xlane.f32.xlu0 %v1226
        %v1228 = vpop.xlane.xlu0 %1227
        %v1229 = vmul.f32 %v1228, %v599
        %v1230 = vsub.f32 %v1224, %v1229
        %v1231 = vmul.f32 %v1230, %v1230
        %v1232 = vsel %vm595, %v1231, 0.0
        %1233 = vadd.xlane.f32.xlu0 %v1232
        %v1234 = vpop.xlane.xlu0 %1233
        %v1235 = vmul.f32 %v1234, %v599
        %v1236 = vadd.f32 %v1235, 1e-05
        %v1237 = vrsqrt.pop %v1236
        %v1238 = vmul.f32 %v1230, %v1237
        %v1239 = vlaneseq
        %v1240 = vshrl.u32 %v1239, 7
        %v1241 = vsub.s32 2, %v1240
        %v1242 = vrot.slane %v593, %v1241
        %v1243 = vmul.f32 %v1238, %v1242
        %v1244 = vlaneseq
        %v1245 = vshrl.u32 %v1244, 7
        %v1246 = vsub.s32 3, %v1245
        %v1247 = vrot.slane %v593, %v1246
        %v1248 = vadd.f32 %v1243, %v1247
        %v1249 = vsel %vm595, %v591, 0.0
        %1250 = vadd.xlane.f32.xlu0 %v1249
        %v1251 = vpop.xlane.xlu0 %1250
        %vm1252 = vcmask 257024
        %v1253 = vsel %vm1252, %v592, 0.0
        %1254 = vadd.xlane.f32.xlu0 %v1253
        %v1255 = vpop.xlane.xlu0 %1254
        %v1256 = vmul.f32 %v1251, %v599
        %v1257 = vmul.f32 %v1255, %v599
        %v1258 = vsub.f32 %v591, %v1256
        %v1259 = vsub.f32 %v592, %v1257
        %v1260 = vmul.f32 %v1258, %v1258
        %v1261 = vmul.f32 %v1259, %v1259
        %v1262 = vsel %vm595, %v1260, 0.0
        %1263 = vadd.xlane.f32.xlu0 %v1262
        %v1264 = vpop.xlane.xlu0 %1263
        %v1265 = vsel %vm1252, %v1261, 0.0
        %1266 = vadd.xlane.f32.xlu0 %v1265
        %v1267 = vpop.xlane.xlu0 %1266
        %v1268 = vmul.f32 %v1264, %v599
        %v1269 = vmul.f32 %v1267, %v599
        %v1270 = vadd.f32 %v1268, 1e-05
        %v1271 = vadd.f32 %v1269, 1e-05
        %v1272 = vrsqrt.pop %v1270
        %v1273 = vrsqrt.pop %v1271
        %v1274 = vmul.f32 %v1258, %v1272
        %v1275 = vmul.f32 %v1259, %v1273
        %v1276 = vmul.f32 %v1274, %v1242
        %v1277 = vmul.f32 %v1275, %v1242
        %v1278 = vadd.f32 %v1276, %v1247
        %v1279 = vadd.f32 %v1277, %v1247
        %v1280 = vld [vmem:[%s559] sm:$0xff]
        %v1281 = vld [vmem:[%s559 + $0x8] sm:$0xff]
        %v1282 = vld [vmem:[%s559 + $0x10] sm:$0xff]
        %v1283 = vld [vmem:[%s559 + $0x18] sm:$0xff]
        %v1284 = vpack.c.bf16 %v1248, %v1248
        %v1285 = vpack.c.bf16 %v1281, %v1280
        %v1286 = vpack.c.bf16 %v1283, %v1282
        %v1288 = vsel %vm595, %v1284, 0
        %1290 = vmatprep.subr.bf16.mxu0 0
        %1291 = vmatpush1.bf16.msra.mxu0 %v1285
        %1292 = vmatprep.subr.bf16.mxu0 0
        %1293 = vmatpush1.bf16.msra.mxu0 %v1286
        %1294 = vmatprep.subr.bf16.mxu0 0
        %1295 = vmatpush1.bf16.msra.mxu0 0
        %1296 = vmatprep.subr.bf16.mxu0 0
        %1297 = vmatpush1.bf16.msra.mxu0 0
        %1298 = vmatprep.subr.bf16.mxu0 0
        %1299 = vmatpush1.bf16.msra.mxu0 0
        %1300 = vmatprep.subr.bf16.mxu0 0
        %1301 = vmatpush1.bf16.msra.mxu0 0
        %1302 = vmatprep.subr.bf16.mxu0 0
        %1303 = vmatpush1.bf16.msra.mxu0 0
        %1304 = vmatprep.subr.bf16.mxu0 0
        %1305 = vmatpush1.bf16.msra.mxu0 0
        %1306 = vmatprep.subr.bf16.mxu0 0
        %1307 = vmatpush1.bf16.msra.mxu0 0
        %1308 = vmatprep.subr.bf16.mxu0 0
        %1309 = vmatpush1.bf16.msra.mxu0 0
        %1310 = vmatprep.subr.bf16.mxu0 0
        %1311 = vmatpush1.bf16.msra.mxu0 0
        %1312 = vmatprep.subr.bf16.mxu0 0
        %1313 = vmatpush1.bf16.msra.mxu0 0
        %1314 = vmatprep.subr.bf16.mxu0 0
        %1315 = vmatpush1.bf16.msra.mxu0 0
        %1316 = vmatprep.subr.bf16.mxu0 0
        %1317 = vmatpush1.bf16.msra.mxu0 0
        %1318 = vmatprep.subr.bf16.mxu0 0
        %1319 = vmatpush1.bf16.msra.mxu0 0
        %1320 = vmatprep.subr.bf16.mxu0 0
        %1321 = vmatpush1.bf16.msra.mxu0 0
        %1322 = vmatprep.mubr.bf16.mxu0 0
        %1323 = vmatmul.mubr.bf16.gmra.mrb[0].mxu0 %v1288
        %v1324 = vpop.f32.mrb[0].mxu0
        %v1325 = vadd.f32 0.0, %v1324
        %v1326 = vpop.f32.mrb[0].mxu0
        %v1327 = vpop.f32.mrb[0].mxu0
        %v1328 = vpop.f32.mrb[0].mxu0
        %1329 = vdwg.mxu0
        %s1330 = scalar_lea.vmem %s559, 64
        %v1331 = vld [vmem:[%s1330] sm:$0xff]
        %v1332 = vld [vmem:[%s1330 + $0x8] sm:$0xff]
        %v1333 = vld [vmem:[%s1330 + $0x10] sm:$0xff]
        %v1334 = vld [vmem:[%s1330 + $0x18] sm:$0xff]
        %v1335 = vpack.c.bf16 %v1279, %v1278
        %v1336 = vpack.c.bf16 %v1332, %v1331
        %v1337 = vpack.c.bf16 %v1334, %v1333
        %v1339 = vsel %vm595, %v1335, 0
        %1341 = vmatprep.subr.bf16.mxu0 0
        %1342 = vmatpush1.bf16.msra.mxu0 %v1336
        %1343 = vmatprep.subr.bf16.mxu0 0
        %1344 = vmatpush1.bf16.msra.mxu0 %v1337
        %1345 = vmatprep.subr.bf16.mxu0 0
        %1346 = vmatpush1.bf16.msra.mxu0 0
        %1347 = vmatprep.subr.bf16.mxu0 0
        %1348 = vmatpush1.bf16.msra.mxu0 0
        %1349 = vmatprep.subr.bf16.mxu0 0
        %1350 = vmatpush1.bf16.msra.mxu0 0
        %1351 = vmatprep.subr.bf16.mxu0 0
        %1352 = vmatpush1.bf16.msra.mxu0 0
        %1353 = vmatprep.subr.bf16.mxu0 0
        %1354 = vmatpush1.bf16.msra.mxu0 0
        %1355 = vmatprep.subr.bf16.mxu0 0
        %1356 = vmatpush1.bf16.msra.mxu0 0
        %1357 = vmatprep.subr.bf16.mxu0 0
        %1358 = vmatpush1.bf16.msra.mxu0 0
        %1359 = vmatprep.subr.bf16.mxu0 0
        %1360 = vmatpush1.bf16.msra.mxu0 0
        %1361 = vmatprep.subr.bf16.mxu0 0
        %1362 = vmatpush1.bf16.msra.mxu0 0
        %1363 = vmatprep.subr.bf16.mxu0 0
        %1364 = vmatpush1.bf16.msra.mxu0 0
        %1365 = vmatprep.subr.bf16.mxu0 0
        %1366 = vmatpush1.bf16.msra.mxu0 0
        %1367 = vmatprep.subr.bf16.mxu0 0
        %1368 = vmatpush1.bf16.msra.mxu0 0
        %1369 = vmatprep.subr.bf16.mxu0 0
        %1370 = vmatpush1.bf16.msra.mxu0 0
        %1371 = vmatprep.subr.bf16.mxu0 0
        %1372 = vmatpush1.bf16.msra.mxu0 0
        %1373 = vmatprep.mubr.bf16.mxu0 0
        %1374 = vmatmul.mubr.bf16.gmra.mrb[0].mxu0 %v1339
        %v1375 = vpop.f32.mrb[0].mxu0
        %v1376 = vadd.f32 0.0, %v1375
        %v1377 = vpop.f32.mrb[0].mxu0
        %v1378 = vpop.f32.mrb[0].mxu0
        %v1379 = vadd.f32 0.0, %v1378
        %v1380 = vpop.f32.mrb[0].mxu0
        %1381 = vdwg.mxu0
        %s1382 = scalar_lea.vmem %s559, 128
        %v1383 = vld [vmem:[%s1382] sm:$0xff]
        %v1384 = vld [vmem:[%s1382 + $0x8] sm:$0xff]
        %v1385 = vld [vmem:[%s1382 + $0x10] sm:$0xff]
        %v1386 = vld [vmem:[%s1382 + $0x18] sm:$0xff]
        %v1387 = vpack.c.bf16 %v1384, %v1383
        %v1388 = vpack.c.bf16 %v1386, %v1385
        %1389 = vmatprep.subr.bf16.mxu0 0
        %1390 = vmatpush1.bf16.msra.mxu0 %v1387
        %1391 = vmatprep.subr.bf16.mxu0 0
        %1392 = vmatpush1.bf16.msra.mxu0 %v1388
        %1393 = vmatprep.subr.bf16.mxu0 0
        %1394 = vmatpush1.bf16.msra.mxu0 0
        %1395 = vmatprep.subr.bf16.mxu0 0
        %1396 = vmatpush1.bf16.msra.mxu0 0
        %1397 = vmatprep.subr.bf16.mxu0 0
        %1398 = vmatpush1.bf16.msra.mxu0 0
        %1399 = vmatprep.subr.bf16.mxu0 0
        %1400 = vmatpush1.bf16.msra.mxu0 0
        %1401 = vmatprep.subr.bf16.mxu0 0
        %1402 = vmatpush1.bf16.msra.mxu0 0
        %1403 = vmatprep.subr.bf16.mxu0 0
        %1404 = vmatpush1.bf16.msra.mxu0 0
        %1405 = vmatprep.subr.bf16.mxu0 0
        %1406 = vmatpush1.bf16.msra.mxu0 0
        %1407 = vmatprep.subr.bf16.mxu0 0
        %1408 = vmatpush1.bf16.msra.mxu0 0
        %1409 = vmatprep.subr.bf16.mxu0 0
        %1410 = vmatpush1.bf16.msra.mxu0 0
        %1411 = vmatprep.subr.bf16.mxu0 0
        %1412 = vmatpush1.bf16.msra.mxu0 0
        %1413 = vmatprep.subr.bf16.mxu0 0
        %1414 = vmatpush1.bf16.msra.mxu0 0
        %1415 = vmatprep.subr.bf16.mxu0 0
        %1416 = vmatpush1.bf16.msra.mxu0 0
        %1417 = vmatprep.subr.bf16.mxu0 0
        %1418 = vmatpush1.bf16.msra.mxu0 0
        %1419 = vmatprep.subr.bf16.mxu0 0
        %1420 = vmatpush1.bf16.msra.mxu0 0
        %1421 = vmatprep.mubr.bf16.mxu0 0
        %1422 = vmatmul.mubr.bf16.gmra.mrb[0].mxu0 %v1339
        %v1423 = vpop.f32.mrb[0].mxu0
        %v1424 = vadd.f32 0.0, %v1423
        %v1425 = vpop.f32.mrb[0].mxu0
        %v1426 = vpop.f32.mrb[0].mxu0
        %v1427 = vadd.f32 0.0, %v1426
        %v1428 = vpop.f32.mrb[0].mxu0
        %1429 = vdwg.mxu0
        %v1430 = vpack.c.bf16 %v1325, %v1325
        %v1431 = vpack.c.bf16 %v1379, %v1376
        %v1433 = vsel %vm766, %v1430, 0
        %v1436 = vsel %vm766, %v1431, 0
        %1438 = vmatprep.subr.bf16.mxu0 0
        %1439 = vmatpush1.bf16.xpose.msra.mxu0 %v1436
        %1440 = vmatprep.subr.bf16.mxu0 0
        %1441 = vmatpush1.bf16.xpose.msra.mxu0 0
        %1442 = vmatprep.subr.bf16.mxu0 0
        %1443 = vmatpush1.bf16.xpose.msra.mxu0 0
        %1444 = vmatprep.subr.bf16.mxu0 0
        %1445 = vmatpush1.bf16.xpose.msra.mxu0 0
        %1446 = vmatprep.subr.bf16.mxu0 0
        %1447 = vmatpush1.bf16.xpose.msra.mxu0 0
        %1448 = vmatprep.subr.bf16.mxu0 0
        %1449 = vmatpush1.bf16.xpose.msra.mxu0 0
        %1450 = vmatprep.subr.bf16.mxu0 0
        %1451 = vmatpush1.bf16.xpose.msra.mxu0 0
        %1452 = vmatprep.subr.bf16.mxu0 0
        %1453 = vmatpush1.bf16.xpose.msra.mxu0 0
        %1454 = vmatprep.subr.bf16.mxu0 0
        %1455 = vmatpush1.bf16.xpose.msra.mxu0 0
        %1456 = vmatprep.subr.bf16.mxu0 0
        %1457 = vmatpush1.bf16.xpose.msra.mxu0 0
        %1458 = vmatprep.subr.bf16.mxu0 0
        %1459 = vmatpush1.bf16.xpose.msra.mxu0 0
        %1460 = vmatprep.subr.bf16.mxu0 0
        %1461 = vmatpush1.bf16.xpose.msra.mxu0 0
        %1462 = vmatprep.subr.bf16.mxu0 0
        %1463 = vmatpush1.bf16.xpose.msra.mxu0 0
        %1464 = vmatprep.subr.bf16.mxu0 0
        %1465 = vmatpush1.bf16.xpose.msra.mxu0 0
        %1466 = vmatprep.subr.bf16.mxu0 0
        %1467 = vmatpush1.bf16.xpose.msra.mxu0 0
        %1468 = vmatprep.subr.bf16.mxu0 0
        %1469 = vmatpush1.bf16.xpose.msra.mxu0 0
        %1470 = vmatprep.mubr.bf16.mxu0 0
        %1471 = vmatmul.mubr.bf16.gmra.mrb[0].mxu0 %v1433
        %v1472 = vpop.f32.mrb[0].mxu0
        %v1473 = vadd.f32 0.0, %v1472
        %v1474 = vpop.f32.mrb[0].mxu0
        %v1475 = vpop.f32.mrb[0].mxu0
        %v1476 = vpop.f32.mrb[0].mxu0
        %1477 = vdwg.mxu0
        %v1478 = vmul.f32 %v1473, 0.25
        %vm1479 = vcmask 97280
        %v1480 = vsel %vm1479, %v1478, -inf
        %1481 = vmax.xlane.f32.xlu0 %v1480
        %v1482 = vpop.xlane.xlu0 %1481
        %v1483 = vsub.f32 %v1478, %v1482
        %v1484 = vmul.f32 %v1483, 1.442695
        %v1485 = vpow.pop %v1484
        %v1486 = vsel %vm1479, %v1485, 0.0
        %1487 = vadd.xlane.f32.xlu0 %v1486
        %v1488 = vpop.xlane.xlu0 %1487
        %v1489 = vrcp.pop %v1488
        %v1490 = vmul.f32 %v1485, %v1489
        %v1491 = vpack.c.bf16 %v1490, %v1490
        %v1492 = vpack.c.bf16 %v1427, %v1424
        %v1494 = vsel %vm1479, %v1491, 0
        %vm1496 = vcmask 1045504
        %v1498 = vsel %vm1496, %v1492, 0
        %1500 = vmatprep.subr.bf16.mxu0 0
        %1501 = vmatpush1.bf16.msra.mxu0 %v1498
        %1502 = vmatprep.subr.bf16.mxu0 0
        %1503 = vmatpush1.bf16.msra.mxu0 0
        %1504 = vmatprep.subr.bf16.mxu0 0
        %1505 = vmatpush1.bf16.msra.mxu0 0
        %1506 = vmatprep.subr.bf16.mxu0 0
        %1507 = vmatpush1.bf16.msra.mxu0 0
        %1508 = vmatprep.subr.bf16.mxu0 0
        %1509 = vmatpush1.bf16.msra.mxu0 0
        %1510 = vmatprep.subr.bf16.mxu0 0
        %1511 = vmatpush1.bf16.msra.mxu0 0
        %1512 = vmatprep.subr.bf16.mxu0 0
        %1513 = vmatpush1.bf16.msra.mxu0 0
        %1514 = vmatprep.subr.bf16.mxu0 0
        %1515 = vmatpush1.bf16.msra.mxu0 0
        %1516 = vmatprep.subr.bf16.mxu0 0
        %1517 = vmatpush1.bf16.msra.mxu0 0
        %1518 = vmatprep.subr.bf16.mxu0 0
        %1519 = vmatpush1.bf16.msra.mxu0 0
        %1520 = vmatprep.subr.bf16.mxu0 0
        %1521 = vmatpush1.bf16.msra.mxu0 0
        %1522 = vmatprep.subr.bf16.mxu0 0
        %1523 = vmatpush1.bf16.msra.mxu0 0
        %1524 = vmatprep.subr.bf16.mxu0 0
        %1525 = vmatpush1.bf16.msra.mxu0 0
        %1526 = vmatprep.subr.bf16.mxu0 0
        %1527 = vmatpush1.bf16.msra.mxu0 0
        %1528 = vmatprep.subr.bf16.mxu0 0
        %1529 = vmatpush1.bf16.msra.mxu0 0
        %1530 = vmatprep.subr.bf16.mxu0 0
        %1531 = vmatpush1.bf16.msra.mxu0 0
        %1532 = vmatprep.mubr.bf16.mxu0 0
        %1533 = vmatmul.mubr.bf16.gmra.mrb[0].mxu0 %v1494
        %v1534 = vpop.f32.mrb[0].mxu0
        %v1535 = vadd.f32 0.0, %v1534
        %v1536 = vpop.f32.mrb[0].mxu0
        %v1537 = vpop.f32.mrb[0].mxu0
        %v1538 = vpop.f32.mrb[0].mxu0
        %1539 = vdwg.mxu0
        %v1540 = vld [vmem:[%s564] sm:$0xff]
        %v1541 = vld [vmem:[%s564 + $0x8] sm:$0xff]
        %v1542 = vpack.c.bf16 %v1535, %v1535
        %v1543 = vpack.c.bf16 %v1541, %v1540
        %s1544 = scalar_lea.vmem %s559, 32
        %v1545 = vld [vmem:[%s1544] sm:$0xff]
        %v1546 = vld [vmem:[%s1544 + $0x8] sm:$0xff]
        %v1547 = vld [vmem:[%s1544 + $0x10] sm:$0xff]
        %v1548 = vld [vmem:[%s1544 + $0x18] sm:$0xff]
        %v1549 = vpack.c.bf16 %v1546, %v1545
        %v1550 = vpack.c.bf16 %v1548, %v1547
        %1551 = vmatprep.subr.bf16.mxu0 0
        %1552 = vmatpush1.bf16.msra.mxu0 %v1549
        %1553 = vmatprep.subr.bf16.mxu0 0
        %1554 = vmatpush1.bf16.msra.mxu0 %v1550
        %1555 = vmatprep.subr.bf16.mxu0 0
        %1556 = vmatpush1.bf16.msra.mxu0 0
        %1557 = vmatprep.subr.bf16.mxu0 0
        %1558 = vmatpush1.bf16.msra.mxu0 0
        %1559 = vmatprep.subr.bf16.mxu0 0
        %1560 = vmatpush1.bf16.msra.mxu0 0
        %1561 = vmatprep.subr.bf16.mxu0 0
        %1562 = vmatpush1.bf16.msra.mxu0 0
        %1563 = vmatprep.subr.bf16.mxu0 0
        %1564 = vmatpush1.bf16.msra.mxu0 0
        %1565 = vmatprep.subr.bf16.mxu0 0
        %1566 = vmatpush1.bf16.msra.mxu0 0
        %1567 = vmatprep.subr.bf16.mxu0 0
        %1568 = vmatpush1.bf16.msra.mxu0 0
        %1569 = vmatprep.subr.bf16.mxu0 0
        %1570 = vmatpush1.bf16.msra.mxu0 0
        %1571 = vmatprep.subr.bf16.mxu0 0
        %1572 = vmatpush1.bf16.msra.mxu0 0
        %1573 = vmatprep.subr.bf16.mxu0 0
        %1574 = vmatpush1.bf16.msra.mxu0 0
        %1575 = vmatprep.subr.bf16.mxu0 0
        %1576 = vmatpush1.bf16.msra.mxu0 0
        %1577 = vmatprep.subr.bf16.mxu0 0
        %1578 = vmatpush1.bf16.msra.mxu0 0
        %1579 = vmatprep.subr.bf16.mxu0 0
        %1580 = vmatpush1.bf16.msra.mxu0 0
        %1581 = vmatprep.subr.bf16.mxu0 0
        %1582 = vmatpush1.bf16.msra.mxu0 0
        %1583 = vmatprep.mubr.bf16.mxu0 0
        %1584 = vmatmul.mubr.bf16.gmra.mrb[0].mxu0 %v1288
        %v1585 = vpop.f32.mrb[0].mxu0
        %v1586 = vadd.f32 0.0, %v1585
        %v1587 = vpop.f32.mrb[0].mxu0
        %v1588 = vpop.f32.mrb[0].mxu0
        %v1589 = vpop.f32.mrb[0].mxu0
        %1590 = vdwg.mxu0
        %s1591 = scalar_lea.vmem %s559, 96
        %v1592 = vld [vmem:[%s1591] sm:$0xff]
        %v1593 = vld [vmem:[%s1591 + $0x8] sm:$0xff]
        %v1594 = vld [vmem:[%s1591 + $0x10] sm:$0xff]
        %v1595 = vld [vmem:[%s1591 + $0x18] sm:$0xff]
        %v1596 = vpack.c.bf16 %v1593, %v1592
        %v1597 = vpack.c.bf16 %v1595, %v1594
        %1598 = vmatprep.subr.bf16.mxu0 0
        %1599 = vmatpush1.bf16.msra.mxu0 %v1596
        %1600 = vmatprep.subr.bf16.mxu0 0
        %1601 = vmatpush1.bf16.msra.mxu0 %v1597
        %1602 = vmatprep.subr.bf16.mxu0 0
        %1603 = vmatpush1.bf16.msra.mxu0 0
        %1604 = vmatprep.subr.bf16.mxu0 0
        %1605 = vmatpush1.bf16.msra.mxu0 0
        %1606 = vmatprep.subr.bf16.mxu0 0
        %1607 = vmatpush1.bf16.msra.mxu0 0
        %1608 = vmatprep.subr.bf16.mxu0 0
        %1609 = vmatpush1.bf16.msra.mxu0 0
        %1610 = vmatprep.subr.bf16.mxu0 0
        %1611 = vmatpush1.bf16.msra.mxu0 0
        %1612 = vmatprep.subr.bf16.mxu0 0
        %1613 = vmatpush1.bf16.msra.mxu0 0
        %1614 = vmatprep.subr.bf16.mxu0 0
        %1615 = vmatpush1.bf16.msra.mxu0 0
        %1616 = vmatprep.subr.bf16.mxu0 0
        %1617 = vmatpush1.bf16.msra.mxu0 0
        %1618 = vmatprep.subr.bf16.mxu0 0
        %1619 = vmatpush1.bf16.msra.mxu0 0
        %1620 = vmatprep.subr.bf16.mxu0 0
        %1621 = vmatpush1.bf16.msra.mxu0 0
        %1622 = vmatprep.subr.bf16.mxu0 0
        %1623 = vmatpush1.bf16.msra.mxu0 0
        %1624 = vmatprep.subr.bf16.mxu0 0
        %1625 = vmatpush1.bf16.msra.mxu0 0
        %1626 = vmatprep.subr.bf16.mxu0 0
        %1627 = vmatpush1.bf16.msra.mxu0 0
        %1628 = vmatprep.subr.bf16.mxu0 0
        %1629 = vmatpush1.bf16.msra.mxu0 0
        %1630 = vmatprep.mubr.bf16.mxu0 0
        %1631 = vmatmul.mubr.bf16.gmra.mrb[0].mxu0 %v1339
        %v1632 = vpop.f32.mrb[0].mxu0
        %v1633 = vadd.f32 0.0, %v1632
        %v1634 = vpop.f32.mrb[0].mxu0
        %v1635 = vpop.f32.mrb[0].mxu0
        %v1636 = vadd.f32 0.0, %v1635
        %v1637 = vpop.f32.mrb[0].mxu0
        %1638 = vdwg.mxu0
        %s1639 = scalar_lea.vmem %s559, 160
        %v1640 = vld [vmem:[%s1639] sm:$0xff]
        %v1641 = vld [vmem:[%s1639 + $0x8] sm:$0xff]
        %v1642 = vld [vmem:[%s1639 + $0x10] sm:$0xff]
        %v1643 = vld [vmem:[%s1639 + $0x18] sm:$0xff]
        %v1644 = vpack.c.bf16 %v1641, %v1640
        %v1645 = vpack.c.bf16 %v1643, %v1642
        %1646 = vmatprep.subr.bf16.mxu0 0
        %1647 = vmatpush1.bf16.msra.mxu0 %v1644
        %1648 = vmatprep.subr.bf16.mxu0 0
        %1649 = vmatpush1.bf16.msra.mxu0 %v1645
        %1650 = vmatprep.subr.bf16.mxu0 0
        %1651 = vmatpush1.bf16.msra.mxu0 0
        %1652 = vmatprep.subr.bf16.mxu0 0
        %1653 = vmatpush1.bf16.msra.mxu0 0
        %1654 = vmatprep.subr.bf16.mxu0 0
        %1655 = vmatpush1.bf16.msra.mxu0 0
        %1656 = vmatprep.subr.bf16.mxu0 0
        %1657 = vmatpush1.bf16.msra.mxu0 0
        %1658 = vmatprep.subr.bf16.mxu0 0
        %1659 = vmatpush1.bf16.msra.mxu0 0
        %1660 = vmatprep.subr.bf16.mxu0 0
        %1661 = vmatpush1.bf16.msra.mxu0 0
        %1662 = vmatprep.subr.bf16.mxu0 0
        %1663 = vmatpush1.bf16.msra.mxu0 0
        %1664 = vmatprep.subr.bf16.mxu0 0
        %1665 = vmatpush1.bf16.msra.mxu0 0
        %1666 = vmatprep.subr.bf16.mxu0 0
        %1667 = vmatpush1.bf16.msra.mxu0 0
        %1668 = vmatprep.subr.bf16.mxu0 0
        %1669 = vmatpush1.bf16.msra.mxu0 0
        %1670 = vmatprep.subr.bf16.mxu0 0
        %1671 = vmatpush1.bf16.msra.mxu0 0
        %1672 = vmatprep.subr.bf16.mxu0 0
        %1673 = vmatpush1.bf16.msra.mxu0 0
        %1674 = vmatprep.subr.bf16.mxu0 0
        %1675 = vmatpush1.bf16.msra.mxu0 0
        %1676 = vmatprep.subr.bf16.mxu0 0
        %1677 = vmatpush1.bf16.msra.mxu0 0
        %1678 = vmatprep.mubr.bf16.mxu0 0
        %1679 = vmatmul.mubr.bf16.gmra.mrb[0].mxu0 %v1339
        %v1680 = vpop.f32.mrb[0].mxu0
        %v1681 = vadd.f32 0.0, %v1680
        %v1682 = vpop.f32.mrb[0].mxu0
        %v1683 = vpop.f32.mrb[0].mxu0
        %v1684 = vadd.f32 0.0, %v1683
        %v1685 = vpop.f32.mrb[0].mxu0
        %1686 = vdwg.mxu0
        %v1687 = vpack.c.bf16 %v1586, %v1586
        %v1688 = vpack.c.bf16 %v1636, %v1633
        %v1690 = vsel %vm766, %v1687, 0
        %v1693 = vsel %vm766, %v1688, 0
        %1695 = vmatprep.subr.bf16.mxu0 0
        %1696 = vmatpush1.bf16.xpose.msra.mxu0 %v1693
        %1697 = vmatprep.subr.bf16.mxu0 0
        %1698 = vmatpush1.bf16.xpose.msra.mxu0 0
        %1699 = vmatprep.subr.bf16.mxu0 0
        %1700 = vmatpush1.bf16.xpose.msra.mxu0 0
        %1701 = vmatprep.subr.bf16.mxu0 0
        %1702 = vmatpush1.bf16.xpose.msra.mxu0 0
        %1703 = vmatprep.subr.bf16.mxu0 0
        %1704 = vmatpush1.bf16.xpose.msra.mxu0 0
        %1705 = vmatprep.subr.bf16.mxu0 0
        %1706 = vmatpush1.bf16.xpose.msra.mxu0 0
        %1707 = vmatprep.subr.bf16.mxu0 0
        %1708 = vmatpush1.bf16.xpose.msra.mxu0 0
        %1709 = vmatprep.subr.bf16.mxu0 0
        %1710 = vmatpush1.bf16.xpose.msra.mxu0 0
        %1711 = vmatprep.subr.bf16.mxu0 0
        %1712 = vmatpush1.bf16.xpose.msra.mxu0 0
        %1713 = vmatprep.subr.bf16.mxu0 0
        %1714 = vmatpush1.bf16.xpose.msra.mxu0 0
        %1715 = vmatprep.subr.bf16.mxu0 0
        %1716 = vmatpush1.bf16.xpose.msra.mxu0 0
        %1717 = vmatprep.subr.bf16.mxu0 0
        %1718 = vmatpush1.bf16.xpose.msra.mxu0 0
        %1719 = vmatprep.subr.bf16.mxu0 0
        %1720 = vmatpush1.bf16.xpose.msra.mxu0 0
        %1721 = vmatprep.subr.bf16.mxu0 0
        %1722 = vmatpush1.bf16.xpose.msra.mxu0 0
        %1723 = vmatprep.subr.bf16.mxu0 0
        %1724 = vmatpush1.bf16.xpose.msra.mxu0 0
        %1725 = vmatprep.subr.bf16.mxu0 0
        %1726 = vmatpush1.bf16.xpose.msra.mxu0 0
        %1727 = vmatprep.mubr.bf16.mxu0 0
        %1728 = vmatmul.mubr.bf16.gmra.mrb[0].mxu0 %v1690
        %v1729 = vpop.f32.mrb[0].mxu0
        %v1730 = vadd.f32 0.0, %v1729
        %v1731 = vpop.f32.mrb[0].mxu0
        %v1732 = vpop.f32.mrb[0].mxu0
        %v1733 = vpop.f32.mrb[0].mxu0
        %1734 = vdwg.mxu0
        %v1735 = vmul.f32 %v1730, 0.25
        %v1736 = vsel %vm1479, %v1735, -inf
        %1737 = vmax.xlane.f32.xlu0 %v1736
        %v1738 = vpop.xlane.xlu0 %1737
        %v1739 = vsub.f32 %v1735, %v1738
        %v1740 = vmul.f32 %v1739, 1.442695
        %v1741 = vpow.pop %v1740
        %v1742 = vsel %vm1479, %v1741, 0.0
        %1743 = vadd.xlane.f32.xlu0 %v1742
        %v1744 = vpop.xlane.xlu0 %1743
        %v1745 = vrcp.pop %v1744
        %v1746 = vmul.f32 %v1741, %v1745
        %v1747 = vpack.c.bf16 %v1746, %v1746
        %v1748 = vpack.c.bf16 %v1684, %v1681
        %v1750 = vsel %vm1479, %v1747, 0
        %v1753 = vsel %vm1496, %v1748, 0
        %1755 = vmatprep.subr.bf16.mxu0 0
        %1756 = vmatpush1.bf16.msra.mxu0 %v1753
        %1757 = vmatprep.subr.bf16.mxu0 0
        %1758 = vmatpush1.bf16.msra.mxu0 0
        %1759 = vmatprep.subr.bf16.mxu0 0
        %1760 = vmatpush1.bf16.msra.mxu0 0
        %1761 = vmatprep.subr.bf16.mxu0 0
        %1762 = vmatpush1.bf16.msra.mxu0 0
        %1763 = vmatprep.subr.bf16.mxu0 0
        %1764 = vmatpush1.bf16.msra.mxu0 0
        %1765 = vmatprep.subr.bf16.mxu0 0
        %1766 = vmatpush1.bf16.msra.mxu0 0
        %1767 = vmatprep.subr.bf16.mxu0 0
        %1768 = vmatpush1.bf16.msra.mxu0 0
        %1769 = vmatprep.subr.bf16.mxu0 0
        %1770 = vmatpush1.bf16.msra.mxu0 0
        %1771 = vmatprep.subr.bf16.mxu0 0
        %1772 = vmatpush1.bf16.msra.mxu0 0
        %1773 = vmatprep.subr.bf16.mxu0 0
        %1774 = vmatpush1.bf16.msra.mxu0 0
        %1775 = vmatprep.subr.bf16.mxu0 0
        %1776 = vmatpush1.bf16.msra.mxu0 0
        %1777 = vmatprep.subr.bf16.mxu0 0
        %1778 = vmatpush1.bf16.msra.mxu0 0
        %1779 = vmatprep.subr.bf16.mxu0 0
        %1780 = vmatpush1.bf16.msra.mxu0 0
        %1781 = vmatprep.subr.bf16.mxu0 0
        %1782 = vmatpush1.bf16.msra.mxu0 0
        %1783 = vmatprep.subr.bf16.mxu0 0
        %1784 = vmatpush1.bf16.msra.mxu0 0
        %1785 = vmatprep.subr.bf16.mxu0 0
        %1786 = vmatpush1.bf16.msra.mxu0 0
        %1787 = vmatprep.mubr.bf16.mxu0 0
        %1788 = vmatmul.mubr.bf16.gmra.mrb[0].mxu0 %v1750
        %v1789 = vpop.f32.mrb[0].mxu0
        %v1790 = vadd.f32 0.0, %v1789
        %v1791 = vpop.f32.mrb[0].mxu0
        %v1792 = vpop.f32.mrb[0].mxu0
        %v1793 = vpop.f32.mrb[0].mxu0
        %1794 = vdwg.mxu0
        %s1795 = scalar_lea.vmem %s564, 16
        %v1796 = vld [vmem:[%s1795] sm:$0xff]
        %v1797 = vld [vmem:[%s1795 + $0x8] sm:$0xff]
        %v1798 = vpack.c.bf16 %v1790, %v1790
        %v1799 = vpack.c.bf16 %v1797, %v1796
        %v1801 = vsel %vm766, %v1798, 0
        %1803 = vmatprep.subr.bf16.mxu0 0
        %1804 = vmatpush1.bf16.msra.mxu0 %v1799
        %1805 = vmatprep.subr.bf16.mxu0 0
        %1806 = vmatpush1.bf16.msra.mxu0 0
        %1807 = vmatprep.subr.bf16.mxu0 0
        %1808 = vmatpush1.bf16.msra.mxu0 0
        %1809 = vmatprep.subr.bf16.mxu0 0
        %1810 = vmatpush1.bf16.msra.mxu0 0
        %1811 = vmatprep.subr.bf16.mxu0 0
        %1812 = vmatpush1.bf16.msra.mxu0 0
        %1813 = vmatprep.subr.bf16.mxu0 0
        %1814 = vmatpush1.bf16.msra.mxu0 0
        %1815 = vmatprep.subr.bf16.mxu0 0
        %1816 = vmatpush1.bf16.msra.mxu0 0
        %1817 = vmatprep.subr.bf16.mxu0 0
        %1818 = vmatpush1.bf16.msra.mxu0 0
        %1819 = vmatprep.subr.bf16.mxu0 0
        %1820 = vmatpush1.bf16.msra.mxu0 0
        %1821 = vmatprep.subr.bf16.mxu0 0
        %1822 = vmatpush1.bf16.msra.mxu0 0
        %1823 = vmatprep.subr.bf16.mxu0 0
        %1824 = vmatpush1.bf16.msra.mxu0 0
        %1825 = vmatprep.subr.bf16.mxu0 0
        %1826 = vmatpush1.bf16.msra.mxu0 0
        %1827 = vmatprep.subr.bf16.mxu0 0
        %1828 = vmatpush1.bf16.msra.mxu0 0
        %1829 = vmatprep.subr.bf16.mxu0 0
        %1830 = vmatpush1.bf16.msra.mxu0 0
        %1831 = vmatprep.subr.bf16.mxu0 0
        %1832 = vmatpush1.bf16.msra.mxu0 0
        %1833 = vmatprep.subr.bf16.mxu0 0
        %1834 = vmatpush1.bf16.msra.mxu0 0
        %1835 = vmatprep.mubr.bf16.mxu0 0
        %1836 = vmatmul.mubr.bf16.gmra.mrb[0].mxu0 %v1801
        %v1837 = vpop.f32.mrb[0].mxu0
        %v1838 = vadd.f32 0.0, %v1837
        %v1839 = vpop.f32.mrb[0].mxu0
        %v1840 = vpop.f32.mrb[0].mxu0
        %v1841 = vpop.f32.mrb[0].mxu0
        %1842 = vdwg.mxu0
        %v1844 = vsel %vm766, %v1542, 0
        %1846 = vmatprep.subr.bf16.mxu0 0
        %1847 = vmatpush1.bf16.msra.mxu0 %v1543
        %1848 = vmatprep.subr.bf16.mxu0 0
        %1849 = vmatpush1.bf16.msra.mxu0 0
        %1850 = vmatprep.subr.bf16.mxu0 0
        %1851 = vmatpush1.bf16.msra.mxu0 0
        %1852 = vmatprep.subr.bf16.mxu0 0
        %1853 = vmatpush1.bf16.msra.mxu0 0
        %1854 = vmatprep.subr.bf16.mxu0 0
        %1855 = vmatpush1.bf16.msra.mxu0 0
        %1856 = vmatprep.subr.bf16.mxu0 0
        %1857 = vmatpush1.bf16.msra.mxu0 0
        %1858 = vmatprep.subr.bf16.mxu0 0
        %1859 = vmatpush1.bf16.msra.mxu0 0
        %1860 = vmatprep.subr.bf16.mxu0 0
        %1861 = vmatpush1.bf16.msra.mxu0 0
        %1862 = vmatprep.subr.bf16.mxu0 0
        %1863 = vmatpush1.bf16.msra.mxu0 0
        %1864 = vmatprep.subr.bf16.mxu0 0
        %1865 = vmatpush1.bf16.msra.mxu0 0
        %1866 = vmatprep.subr.bf16.mxu0 0
        %1867 = vmatpush1.bf16.msra.mxu0 0
        %1868 = vmatprep.subr.bf16.mxu0 0
        %1869 = vmatpush1.bf16.msra.mxu0 0
        %1870 = vmatprep.subr.bf16.mxu0 0
        %1871 = vmatpush1.bf16.msra.mxu0 0
        %1872 = vmatprep.subr.bf16.mxu0 0
        %1873 = vmatpush1.bf16.msra.mxu0 0
        %1874 = vmatprep.subr.bf16.mxu0 0
        %1875 = vmatpush1.bf16.msra.mxu0 0
        %1876 = vmatprep.subr.bf16.mxu0 0
        %1877 = vmatpush1.bf16.msra.mxu0 0
        %1878 = vmatprep.mubr.bf16.mxu0 0
        %1879 = vmatmul.mubr.bf16.gmra.mrb[0].mxu0 %v1844
        %v1880 = vpop.f32.mrb[0].mxu0
        %v1881 = vadd.f32 %v1838, %v1880
        %v1882 = vpop.f32.mrb[0].mxu0
        %v1883 = vpop.f32.mrb[0].mxu0
        %v1884 = vpop.f32.mrb[0].mxu0
        %1885 = vdwg.mxu0
        %v1886 = vlaneseq
        %v1887 = vshrl.u32 %v1886, 7
        %v1888 = vsub.s32 1, %v1887
        %v1889 = vrot.slane %v594, %v1888
        %v1890 = vadd.f32 %v1881, %v1889
        %v1891 = vadd.f32 %v1224, %v1890
        %v1892 = vsel %vm595, %v1891, 0.0
        %1893 = vadd.xlane.f32.xlu0 %v1892
        %v1894 = vpop.xlane.xlu0 %1893
        %v1895 = vmul.f32 %v1894, %v599
        %v1896 = vsub.f32 %v1891, %v1895
        %v1897 = vmul.f32 %v1896, %v1896
        %v1898 = vsel %vm595, %v1897, 0.0
        %1899 = vadd.xlane.f32.xlu0 %v1898
        %v1900 = vpop.xlane.xlu0 %1899
        %v1901 = vmul.f32 %v1900, %v599
        %v1902 = vadd.f32 %v1901, 1e-05
        %v1903 = vrsqrt.pop %v1902
        %v1904 = vmul.f32 %v1896, %v1903
        %v1905 = vlaneseq
        %v1906 = vshrl.u32 %v1905, 7
        %v1907 = vsub.s32 4, %v1906
        %v1908 = vrot.slane %v593, %v1907
        %v1909 = vmul.f32 %v1904, %v1908
        %v1910 = vlaneseq
        %v1911 = vshrl.u32 %v1910, 7
        %v1912 = vsub.s32 5, %v1911
        %v1913 = vrot.slane %v593, %v1912
        %v1914 = vadd.f32 %v1909, %v1913
        %v1915 = vld [vmem:[%s569] sm:$0xff]
        %v1916 = vld [vmem:[%s569 + $0x8] sm:$0xff]
        %v1917 = vld [vmem:[%s569 + $0x10] sm:$0xff]
        %v1918 = vld [vmem:[%s569 + $0x18] sm:$0xff]
        %v1919 = vpack.c.bf16 %v1914, %v1914
        %v1920 = vpack.c.bf16 %v1916, %v1915
        %v1921 = vpack.c.bf16 %v1918, %v1917
        %v1922 = vld [vmem:[%s572] sm:$0x1]
        %v1924 = vlaneseq
        %v1925 = vshrl.u32 %v1924, 7
        %v1926 = vsub.s32 0, %v1925
        %v1927 = vrot.slane %v1922, %v1926
        %v1930 = vsel %vm595, %v1919, 0
        %1932 = vmatprep.subr.bf16.mxu0 0
        %1933 = vmatpush1.bf16.msra.mxu0 %v1920
        %1934 = vmatprep.subr.bf16.mxu0 0
        %1935 = vmatpush1.bf16.msra.mxu0 %v1921
        %1936 = vmatprep.subr.bf16.mxu0 0
        %1937 = vmatpush1.bf16.msra.mxu0 0
        %1938 = vmatprep.subr.bf16.mxu0 0
        %1939 = vmatpush1.bf16.msra.mxu0 0
        %1940 = vmatprep.subr.bf16.mxu0 0
        %1941 = vmatpush1.bf16.msra.mxu0 0
        %1942 = vmatprep.subr.bf16.mxu0 0
        %1943 = vmatpush1.bf16.msra.mxu0 0
        %1944 = vmatprep.subr.bf16.mxu0 0
        %1945 = vmatpush1.bf16.msra.mxu0 0
        %1946 = vmatprep.subr.bf16.mxu0 0
        %1947 = vmatpush1.bf16.msra.mxu0 0
        %1948 = vmatprep.subr.bf16.mxu0 0
        %1949 = vmatpush1.bf16.msra.mxu0 0
        %1950 = vmatprep.subr.bf16.mxu0 0
        %1951 = vmatpush1.bf16.msra.mxu0 0
        %1952 = vmatprep.subr.bf16.mxu0 0
        %1953 = vmatpush1.bf16.msra.mxu0 0
        %1954 = vmatprep.subr.bf16.mxu0 0
        %1955 = vmatpush1.bf16.msra.mxu0 0
        %1956 = vmatprep.subr.bf16.mxu0 0
        %1957 = vmatpush1.bf16.msra.mxu0 0
        %1958 = vmatprep.subr.bf16.mxu0 0
        %1959 = vmatpush1.bf16.msra.mxu0 0
        %1960 = vmatprep.subr.bf16.mxu0 0
        %1961 = vmatpush1.bf16.msra.mxu0 0
        %1962 = vmatprep.subr.bf16.mxu0 0
        %1963 = vmatpush1.bf16.msra.mxu0 0
        %1964 = vmatprep.mubr.bf16.mxu0 0
        %1965 = vmatmul.mubr.bf16.gmra.mrb[0].mxu0 %v1930
        %v1966 = vpop.f32.mrb[0].mxu0
        %v1967 = vadd.f32 %v1927, %v1966
        %v1968 = vpop.f32.mrb[0].mxu0
        %v1969 = vpop.f32.mrb[0].mxu0
        %v1970 = vpop.f32.mrb[0].mxu0
        %1971 = vdwg.mxu0
        %v1972 = vmax.f32 %v1967, 0.0
        %v1973 = vld [vmem:[%s577] sm:$0xff]
        %v1974 = vld [vmem:[%s577 + $0x8] sm:$0xff]
        %v1975 = vld [vmem:[%s577 + $0x10] sm:$0xff]
        %v1976 = vld [vmem:[%s577 + $0x18] sm:$0xff]
        %v1977 = vld [vmem:[%s577 + $0x20] sm:$0xff]
        %v1978 = vld [vmem:[%s577 + $0x28] sm:$0xff]
        %v1979 = vld [vmem:[%s577 + $0x30] sm:$0xff]
        %v1980 = vld [vmem:[%s577 + $0x38] sm:$0xff]
        %v1981 = vld [vmem:[%s577 + $0x40] sm:$0xff]
        %v1982 = vld [vmem:[%s577 + $0x48] sm:$0xff]
        %v1983 = vld [vmem:[%s577 + $0x50] sm:$0xff]
        %v1984 = vld [vmem:[%s577 + $0x58] sm:$0xff]
        %v1985 = vld [vmem:[%s577 + $0x60] sm:$0xff]
        %v1986 = vld [vmem:[%s577 + $0x68] sm:$0xff]
        %v1987 = vld [vmem:[%s577 + $0x70] sm:$0xff]
        %v1988 = vld [vmem:[%s577 + $0x78] sm:$0xff]
        %v1989 = vpack.c.bf16 %v1972, %v1972
        %v1990 = vpack.c.bf16 %v1974, %v1973
        %v1991 = vpack.c.bf16 %v1976, %v1975
        %v1992 = vpack.c.bf16 %v1978, %v1977
        %v1993 = vpack.c.bf16 %v1980, %v1979
        %v1994 = vpack.c.bf16 %v1982, %v1981
        %v1995 = vpack.c.bf16 %v1984, %v1983
        %v1996 = vpack.c.bf16 %v1986, %v1985
        %v1997 = vpack.c.bf16 %v1988, %v1987
        %1998 = vmatprep.subr.bf16.mxu0 0
        %1999 = vmatpush1.bf16.msra.mxu0 %v1990
        %2000 = vmatprep.subr.bf16.mxu0 0
        %2001 = vmatpush1.bf16.msra.mxu0 %v1991
        %2002 = vmatprep.subr.bf16.mxu0 0
        %2003 = vmatpush1.bf16.msra.mxu0 %v1992
        %2004 = vmatprep.subr.bf16.mxu0 0
        %2005 = vmatpush1.bf16.msra.mxu0 %v1993
        %2006 = vmatprep.subr.bf16.mxu0 0
        %2007 = vmatpush1.bf16.msra.mxu0 %v1994
        %2008 = vmatprep.subr.bf16.mxu0 0
        %2009 = vmatpush1.bf16.msra.mxu0 %v1995
        %2010 = vmatprep.subr.bf16.mxu0 0
        %2011 = vmatpush1.bf16.msra.mxu0 %v1996
        %2012 = vmatprep.subr.bf16.mxu0 0
        %2013 = vmatpush1.bf16.msra.mxu0 %v1997
        %2014 = vmatprep.subr.bf16.mxu0 0
        %2015 = vmatpush1.bf16.msra.mxu0 0
        %2016 = vmatprep.subr.bf16.mxu0 0
        %2017 = vmatpush1.bf16.msra.mxu0 0
        %2018 = vmatprep.subr.bf16.mxu0 0
        %2019 = vmatpush1.bf16.msra.mxu0 0
        %2020 = vmatprep.subr.bf16.mxu0 0
        %2021 = vmatpush1.bf16.msra.mxu0 0
        %2022 = vmatprep.subr.bf16.mxu0 0
        %2023 = vmatpush1.bf16.msra.mxu0 0
        %2024 = vmatprep.subr.bf16.mxu0 0
        %2025 = vmatpush1.bf16.msra.mxu0 0
        %2026 = vmatprep.subr.bf16.mxu0 0
        %2027 = vmatpush1.bf16.msra.mxu0 0
        %2028 = vmatprep.subr.bf16.mxu0 0
        %2029 = vmatpush1.bf16.msra.mxu0 0
        %2030 = vmatprep.mubr.bf16.mxu0 0
        %2031 = vmatmul.mubr.bf16.gmra.mrb[0].mxu0 %v1989
        %v2032 = vpop.f32.mrb[0].mxu0
        %v2033 = vadd.f32 0.0, %v2032
        %v2034 = vpop.f32.mrb[0].mxu0
        %v2035 = vpop.f32.mrb[0].mxu0
        %v2036 = vpop.f32.mrb[0].mxu0
        %2037 = vdwg.mxu0
        %v2038 = vadd.f32 %v1891, %v2033
        %v2039 = vlaneseq
        %v2040 = vshrl.u32 %v2039, 7
        %v2041 = vsub.s32 2, %v2040
        %v2042 = vrot.slane %v594, %v2041
        %v2043 = vadd.f32 %v2038, %v2042
        %2044 = vst.msk [vmem:[%s531] sm:$0xff] %vm595, %v2043
        %s2045 = sand.u32 %s331, 1
        %s2046 = scalar_lea.sflag [#allocation4], %s2045
        %s2047 = sand.u32 %s331, 1
        %s2048 = smul.addr %s2047, 8
        %s2049 = scalar_lea.vmem [#allocation3], %s2048
        // Predicated region
        $region69: #{decoder_forward.1} parent=63 // pred_check
          %p2050 = pneg %p341
        $region70: #{decoder_forward.1} parent=63 // pred_check_branch
          %2052 = sbr.rel (%p2050) target = $region72
        $region71: #{decoder_forward.1} parent=63 // pred_region
          %s2054 = ssub.s32 128, 128
          %2055 = vsyncadd %s2046, %s2054
          %s2056 = smul.addr %s29, 128
          %s2057 = scalar_lea.hbm %s11, %s2056
          %s2059 = sshll.u32 %s2049, 4
          %s2060 = int_to_ptr.vmem [resolvable:$true] %s2059
          %2062 = dma.vmem_to_hbm [thread:$0]  %s2060, 128, %s2057, %s2046
        $region72: #{decoder_forward.1} parent=63 // pred_fallthru
          _
      $region64: #{decoder_forward.1} parent=5 // pred_fallthru
        _
      %p2063 = scmp.le.s32.totalorder 2, %s20
      // Predicated region
      $region73: #{decoder_forward.1} parent=5 // pred_check
        %p2064 = pneg %p2063
      $region74: #{decoder_forward.1} parent=5 // pred_check_branch
        %2066 = sbr.rel (%p2064) target = $region76
      $region75: #{decoder_forward.1} parent=5 // pred_region
        %s2067 = ssub.s32 %s20, 2
        // Predicated region
        $region77: #{decoder_forward.1} parent=75 // pred_check
          %p2068 = pneg %p347
        $region78: #{decoder_forward.1} parent=75 // pred_check_branch
          %2070 = sbr.rel (%p2068) target = $region80
        $region79: #{decoder_forward.1} parent=75 // pred_region
          %s2071 = sand.u32 %s332, 1
          %s2072 = scalar_lea.sflag [#allocation4], %s2071
          %s2073 = sand.u32 %s332, 1
          %s2074 = smul.addr %s2073, 8
          %s2075 = scalar_lea.vmem [#allocation3], %s2074
          %2076 = dma.done %s2072, 128
        $region80: #{decoder_forward.1} parent=75 // pred_fallthru
          _
      $region76: #{decoder_forward.1} parent=5 // pred_fallthru
        _
    $region6: #{decoder_forward.1} parent=1 // loop_footer
      %s24 = sadd.s32 1, %s20
    $region7: #{decoder_forward.1} parent=1 // loop_footer_branch
      %19 = sbr.rel target = $region3
    $region8: #{decoder_forward.1} parent=1 // loop_exit
      _
    %2077 = vsyncpa [#allocation4], 1
    %s2078 = scalar_lea.sflag [#allocation4], 1
    %2079 = vsyncpa %s2078, 1

</llo_original>
